<compile_context>
chip_gen: v5e
topology: v5e:2x2
jax: 0.10.0
libtpu: 0.0.40
codegen_flags: <defaults>
</compile_context>

<pallas_src>
import jax
import jax.numpy as jnp
from jax.experimental import pallas as pl
from jax.experimental.pallas import tpu as pltpu

_HIGHEST = jax.lax.Precision.HIGHEST
# TODO(synk): benchmark Precision.HIGH (bf16_3x) per-dot -- ~2x less MXU work on
# the (C,P)@(P,P) contraction and almost certainly still passes 1e-4; HIGHEST is
# kept because it is the proven-lowering, exact-f32 setting for this kernel.


def _s_gcn_kernel(x_ref, wf_ref, abd_ref, wbc_ref, cola_ref, b1_ref, w2_ref,
                  b2_ref, o_ref):
    """One grid step: a (block_n, C, P) channel-major slab, P a 128-multiple."""
    block_n = x_ref.shape[0]
    # NOTE: at tiny C (demo C=8) the two channel-mix dots fill only a sliver of
    # an MXU tile; that's fine -- the kernel is step-overhead/HBM bound there.
    # At production C >= 128 this layout (C on the matmul row axis) is already
    # the right one, so no layout change is needed across that crossover.
    for b in range(block_n):        # static, small (<= ~8); unrolled at trace
        x = x_ref[b]                                                   # (C, P)

        # fused conv1x1 + linear1 channel mixing (Wf = W1 @ Wc); (out, in)
        # weights left-multiply with no transpose.
        g = jnp.dot(wf_ref[...], x, preferred_element_type=jnp.float32,
                    precision=_HIGHEST)                                # (C, P)

        # graph contraction over V: block-diagonal I_{block_t} (x) A acting on
        # the (t, v)-flattened lane axis -- one plain 2-D MXU matmul.
        h = jnp.dot(g, abd_ref[...], preferred_element_type=jnp.float32,
                    precision=_HIGHEST)                                # (C, P)
        # folded conv bias: rank-1 (W1@bc) x tiled col-sums of A, plus b1 (VPU).
        h = h + wbc_ref[...] * cola_ref[...] + b1_ref[...]
        h = jnp.where(h > 0, h, 0.01 * h)          # LeakyReLU(0.01)

        # linear2
        m = jnp.dot(w2_ref[...], h, preferred_element_type=jnp.float32,
                    precision=_HIGHEST)                                # (C, P)
        m = m + b2_ref[...]
        m = jnp.where(m > 0, m, 0.01 * m)          # LeakyReLU(0.01)

        # identity residual (in_ch == out_ch) + ReLU; lane-dense store.
        o_ref[b] = jnp.maximum(m + x, 0.0)


def _pick_block_t(T, V, C):
    """Largest divisor of T with block_t*V <= cap; prefers 128-aligned widths.

    cap shrinks at large C to bound the I(x)A kron FLOP waste (C*P*P MACs for
    only C*P*V useful).  Never falls back to block_t = T, so the kron operand
    stays O(cap^2) -- the previous `return T` fallback could build a (T*V)^2
    operand (hundreds of MiB) on realistic ST-GCN shapes.
    """
    cap = 512 if C < 128 else 256
    best_any, best_aligned = 1, None
    for d in range(1, T + 1):
        if T % d:
            continue
        if d * V > cap:
            break
        best_any = d
        if (d * V) % 128 == 0:
            best_aligned = d
    return best_aligned if best_aligned is not None else best_any


def _pick_block_n(N, C, P, nb_t):
    """Largest divisor of N giving a <= 2 MiB x-slab while keeping >= 2 grid
    steps (both v7x TensorCores busy); amortizes per-step pipeline overhead on
    v5e/v6e where VMEM (128 MiB) is plentiful."""
    best = 1
    for d in range(1, N + 1):
        if N % d:
            continue
        if d * C * P * 4 > (2 << 20):
            break
        if (N // d) * nb_t >= 2:
            best = d
    return best


def s_gcn_forward(x, A, params, *, block_t=None, block_n=None):
    """x: (N, C, T, V) float32, A: (1, V, V) float32. Returns (out, A)."""
    N, C, T, V = x.shape
    assert A.shape == (1, V, V), "kernel implements the K == 1 case"
    # TODO(synk): K > 1 graph kernels and the conv+BN residual branch
    # (in_ch != out_ch) are not exercised by the reference forward; unimplemented.

    wc = params["wc"].astype(jnp.float32)          # (C, C) conv weight (out, in)
    bc = params["bc"].astype(jnp.float32)          # (C,)
    w1 = params["w1"].astype(jnp.float32)          # (C, C)
    b1 = params["b1"].astype(jnp.float32)          # (C,)
    w2 = params["w2"].astype(jnp.float32)          # (C, C)
    b2 = params["b2"].astype(jnp.float32)          # (C,)
    assert wc.shape == (C, C) and w2.shape == (C, C), "needs in_ch == out_ch"

    if block_t is None:
        block_t = _pick_block_t(T, V, C)
    assert T % block_t == 0
    nb_t = T // block_t
    p0 = block_t * V                     # useful lane width per block
    P = pl.cdiv(p0, 128) * 128           # lane-dense (128-aligned) block width
    pad = P - p0

    if block_n is None:
        block_n = _pick_block_n(N, C, P, nb_t)
    assert N % block_n == 0

    # ---- grid-invariant operands, prepared once at trace time ----------------
    a0 = A[0].astype(jnp.float32)
    # NOTE: folding W1@Wc / W1@bc changes summation order vs the reference; it
    # passes 1e-4 here -- keep a tolerance check in CI at production shapes.
    wf = jnp.dot(w1, wc, precision=_HIGHEST)                       # (C, C)
    wbc = jnp.dot(w1, bc, precision=_HIGHEST).reshape(C, 1)        # (C, 1)
    col_a = jnp.sum(a0, axis=0)                                    # (V,)
    cola = jnp.tile(col_a, block_t)                                # (p0,)
    a_bd = jnp.kron(jnp.eye(block_t, dtype=jnp.float32), a0)       # (p0, p0)
    if pad:
        cola = jnp.pad(cola, (0, pad))
        a_bd = jnp.pad(a_bd, ((0, pad), (0, pad)))
    cola = cola.reshape(1, P)
    b1c = b1.reshape(C, 1)
    b2c = b2.reshape(C, 1)

    # channel-major view of the activations; the reshape is free and the
    # zero-pad (one extra HBM pass) only materializes when block_t*V is not
    # already a multiple of 128.
    x_flat = x.astype(jnp.float32).reshape(N, C, nb_t, p0)
    if pad:
        x_flat = jnp.pad(x_flat, ((0, 0), (0, 0), (0, 0), (0, pad)))
    x_flat = x_flat.reshape(N, C, nb_t * P)

    grid = (N // block_n, nb_t)          # batch axis (even) first: v7x balance
    inv = lambda shape: pl.BlockSpec(shape, lambda n, t: (0,) * len(shape))

    out_flat = pl.pallas_call(
        _s_gcn_kernel,
        out_shape=jax.ShapeDtypeStruct((N, C, nb_t * P), jnp.float32),
        grid=grid,
        in_specs=[
            pl.BlockSpec((block_n, C, P), lambda n, t: (n, 0, t)),  # x slab
            inv((C, C)),    # wf  = W1 @ Wc
            inv((P, P)),    # I (x) A, zero-padded to the lane-dense width
            inv((C, 1)),    # W1 @ bc        (rank-1 bias factor)
            inv((1, P)),    # tiled column sums of A (rank-1 bias factor)
            inv((C, 1)),    # b1
            inv((C, C)),    # W2
            inv((C, 1)),    # b2
        ],
        out_specs=pl.BlockSpec((block_n, C, P), lambda n, t: (n, 0, t)),
        compiler_params=pltpu.CompilerParams(
            dimension_semantics=("parallel", "parallel"),
            # explicit budget: double-buffered (block_n,C,P) in/out slabs +
            # P^2 kron operand + weights stay far below this on v5e/v6e/v7x.
            vmem_limit_bytes=32 * 1024 * 1024),
    )(x_flat, wf, a_bd, wbc, cola, b1c, w2, b2c)

    out = out_flat.reshape(N, C, nb_t, P)
    if pad:
        out = out[..., :p0]              # drop the zero-padded lanes
    return out.reshape(N, C, T, V), A


def _ref_forward(x, A, p):
    """Pure-JAX reference mirroring the PyTorch forward (no folding)."""
    N, C, T, V = x.shape
    with jax.default_matmul_precision("highest"):    # scoped, not global
        y = jnp.einsum("oc,nctv->notv", p["wc"], x) + p["bc"][None, :, None, None]
        z = jnp.einsum("nctv,vw->nctw", y, A[0])     # K == 1 einsum
        zt = z.transpose(0, 2, 3, 1).reshape(-1, C)
        h = zt @ p["w1"].T + p["b1"]
        h = jnp.where(h > 0, h, 0.01 * h)
        m = h @ p["w2"].T + p["b2"]
        m = jnp.where(m > 0, m, 0.01 * m)
        m = m.reshape(N, T, V, C).transpose(0, 3, 1, 2)
        return jnp.maximum(m + x, 0.0)


if __name__ == "__main__":
    key = jax.random.PRNGKey(0)
    ks = jax.random.split(key, 6)

    def make_params(C, k0):
        kk = jax.random.split(k0, 6)
        return {
            "wc": jax.random.normal(kk[0], (C, C), jnp.float32) * 0.1,
            "bc": jax.random.normal(kk[1], (C,), jnp.float32) * 0.1,
            "w1": jax.random.normal(kk[2], (C, C), jnp.float32) * 0.1,
            "b1": jax.random.normal(kk[3], (C,), jnp.float32) * 0.1,
            "w2": jax.random.normal(kk[4], (C, C), jnp.float32) * 0.1,
            "b2": jax.random.normal(kk[5], (C,), jnp.float32) * 0.1,
        }

    fwd = jax.jit(s_gcn_forward, static_argnames=("block_t", "block_n"))

    # case 1: lane-dense path (block_t*V is a 128-multiple): N=2, C=8, T=16, V=16.
    N, C, T, V = 2, 8, 16, 16
    x = jax.random.normal(ks[0], (N, C, T, V), dtype=jnp.float32)
    A = jax.random.uniform(ks[1], (1, V, V), dtype=jnp.float32) * 0.25
    params = make_params(C, ks[2])
    out, A_out = fwd(x, A, params)
    out = jax.block_until_ready(out)
    ref = _ref_forward(x, A, params)
    assert out.shape == (N, C, T, V)
    assert bool(jnp.allclose(out, ref, rtol=1e-4, atol=1e-4))
    assert bool(jnp.allclose(A_out, A))

    # case 2: same data, explicit multi-sample slab (block_n=2) + smaller block_t.
    out2, _ = fwd(x, A, params, block_t=8, block_n=2)
    out2 = jax.block_until_ready(out2)
    assert bool(jnp.allclose(out2, ref, rtol=1e-4, atol=1e-4))

    # case 3: V with no 128-compatible divisor (V=20, T=12) -> padded lane axis.
    N3, C3, T3, V3 = 2, 8, 12, 20
    x3 = jax.random.normal(ks[3], (N3, C3, T3, V3), dtype=jnp.float32)
    A3 = jax.random.uniform(ks[4], (1, V3, V3), dtype=jnp.float32) * 0.25
    params3 = make_params(C3, ks[5])
    out3, _ = fwd(x3, A3, params3)
    out3 = jax.block_until_ready(out3)
    ref3 = _ref_forward(x3, A3, params3)
    assert out3.shape == (N3, C3, T3, V3)
    assert bool(jnp.allclose(out3, ref3, rtol=1e-4, atol=1e-4))

    print("KERNEL_OK")
</pallas_src>

<mosaic_0001>
module attributes {stable_mosaic.version = 11 : i64} {
  func.func @_s_gcn_kernel(%arg0: i32, %arg1: i32, %arg2: memref<1x8x256xf32, #tpu.memory_space<vmem>>, %arg3: memref<8x8xf32, #tpu.memory_space<vmem>>, %arg4: memref<256x256xf32, #tpu.memory_space<vmem>>, %arg5: memref<8x1xf32, #tpu.memory_space<vmem>>, %arg6: memref<1x256xf32, #tpu.memory_space<vmem>>, %arg7: memref<8x1xf32, #tpu.memory_space<vmem>>, %arg8: memref<8x8xf32, #tpu.memory_space<vmem>>, %arg9: memref<8x1xf32, #tpu.memory_space<vmem>>, %arg10: memref<1x8x256xf32, #tpu.memory_space<vmem>>) attributes {dimension_semantics = [#tpu.dimension_semantics<parallel>, #tpu.dimension_semantics<parallel>], iteration_bounds = array<i64: 2, 1>, scalar_prefetch = 0 : i64, scratch_operands = 0 : i64, tpu.core_type = #tpu.core_type<tc>, window_params = [{transform_indices = @transform_0, window_bounds = array<i64: 1, 8, 256>}, {pipeline_mode = #tpu.pipeline_mode<synchronous>, transform_indices = @transform_1, window_bounds = array<i64: 8, 8>}, {pipeline_mode = #tpu.pipeline_mode<synchronous>, transform_indices = @transform_2, window_bounds = array<i64: 256, 256>}, {pipeline_mode = #tpu.pipeline_mode<synchronous>, transform_indices = @transform_3, window_bounds = array<i64: 8, 1>}, {pipeline_mode = #tpu.pipeline_mode<synchronous>, transform_indices = @transform_4, window_bounds = array<i64: 1, 256>}, {pipeline_mode = #tpu.pipeline_mode<synchronous>, transform_indices = @transform_5, window_bounds = array<i64: 8, 1>}, {pipeline_mode = #tpu.pipeline_mode<synchronous>, transform_indices = @transform_6, window_bounds = array<i64: 8, 8>}, {pipeline_mode = #tpu.pipeline_mode<synchronous>, transform_indices = @transform_7, window_bounds = array<i64: 8, 1>}, {transform_indices = @transform_8, window_bounds = array<i64: 1, 8, 256>}]} {
    %c0 = arith.constant 0 : index
    %c0_0 = arith.constant 0 : index
    %c0_1 = arith.constant 0 : index
    %0 = vector.load %arg2[%c0, %c0_0, %c0_1] : memref<1x8x256xf32, #tpu.memory_space<vmem>>, vector<1x8x256xf32>
    %1 = vector.shape_cast %0 : vector<1x8x256xf32> to vector<8x256xf32>
    %c0_2 = arith.constant 0 : index
    %c0_3 = arith.constant 0 : index
    %2 = vector.load %arg3[%c0_2, %c0_3] : memref<8x8xf32, #tpu.memory_space<vmem>>, vector<8x8xf32>
    %cst = arith.constant dense<0.000000e+00> : vector<8x256xf32>
    %3 = tpu.matmul %2, %1, %cst {dimension_numbers = #tpu.dot_dimension_numbers<[1], [0], [0], [1], [0, 0, 1, 1], [], []>, precision = #tpu.contract_precision<fp32>} : vector<8x8xf32>, vector<8x256xf32>, vector<8x256xf32> -> vector<8x256xf32>
    %c0_4 = arith.constant 0 : index
    %c0_5 = arith.constant 0 : index
    %4 = vector.load %arg4[%c0_4, %c0_5] : memref<256x256xf32, #tpu.memory_space<vmem>>, vector<256x256xf32>
    %cst_6 = arith.constant dense<0.000000e+00> : vector<8x256xf32>
    %5 = tpu.matmul %3, %4, %cst_6 {dimension_numbers = #tpu.dot_dimension_numbers<[1], [0], [0], [1], [0, 0, 1, 1], [], []>, precision = #tpu.contract_precision<fp32>} : vector<8x256xf32>, vector<256x256xf32>, vector<8x256xf32> -> vector<8x256xf32>
    %c0_7 = arith.constant 0 : index
    %c0_8 = arith.constant 0 : index
    %6 = vector.load %arg5[%c0_7, %c0_8] : memref<8x1xf32, #tpu.memory_space<vmem>>, vector<8x1xf32>
    %c0_9 = arith.constant 0 : index
    %c0_10 = arith.constant 0 : index
    %7 = vector.load %arg6[%c0_9, %c0_10] : memref<1x256xf32, #tpu.memory_space<vmem>>, vector<1x256xf32>
    %8 = vector.broadcast %6 : vector<8x1xf32> to vector<8x256xf32>
    %9 = vector.broadcast %7 : vector<1x256xf32> to vector<8x256xf32>
    %10 = arith.mulf %8, %9 : vector<8x256xf32>
    %11 = arith.addf %5, %10 : vector<8x256xf32>
    %c0_11 = arith.constant 0 : index
    %c0_12 = arith.constant 0 : index
    %12 = vector.load %arg7[%c0_11, %c0_12] : memref<8x1xf32, #tpu.memory_space<vmem>>, vector<8x1xf32>
    %13 = vector.broadcast %12 : vector<8x1xf32> to vector<8x256xf32>
    %14 = arith.addf %11, %13 : vector<8x256xf32>
    %cst_13 = arith.constant 0.000000e+00 : f32
    %15 = vector.broadcast %cst_13 : f32 to vector<8x256xf32>
    %16 = arith.cmpf ogt, %14, %15 : vector<8x256xf32>
    %cst_14 = arith.constant 0.00999999977 : f32
    %17 = vector.broadcast %cst_14 : f32 to vector<8x256xf32>
    %18 = arith.mulf %17, %14 : vector<8x256xf32>
    %19 = arith.select %16, %14, %18 : vector<8x256xi1>, vector<8x256xf32>
    %c0_15 = arith.constant 0 : index
    %c0_16 = arith.constant 0 : index
    %20 = vector.load %arg8[%c0_15, %c0_16] : memref<8x8xf32, #tpu.memory_space<vmem>>, vector<8x8xf32>
    %cst_17 = arith.constant dense<0.000000e+00> : vector<8x256xf32>
    %21 = tpu.matmul %20, %19, %cst_17 {dimension_numbers = #tpu.dot_dimension_numbers<[1], [0], [0], [1], [0, 0, 1, 1], [], []>, precision = #tpu.contract_precision<fp32>} : vector<8x8xf32>, vector<8x256xf32>, vector<8x256xf32> -> vector<8x256xf32>
    %c0_18 = arith.constant 0 : index
    %c0_19 = arith.constant 0 : index
    %22 = vector.load %arg9[%c0_18, %c0_19] : memref<8x1xf32, #tpu.memory_space<vmem>>, vector<8x1xf32>
    %23 = vector.broadcast %22 : vector<8x1xf32> to vector<8x256xf32>
    %24 = arith.addf %21, %23 : vector<8x256xf32>
    %cst_20 = arith.constant 0.000000e+00 : f32
    %25 = vector.broadcast %cst_20 : f32 to vector<8x256xf32>
    %26 = arith.cmpf ogt, %24, %25 : vector<8x256xf32>
    %cst_21 = arith.constant 0.00999999977 : f32
    %27 = vector.broadcast %cst_21 : f32 to vector<8x256xf32>
    %28 = arith.mulf %27, %24 : vector<8x256xf32>
    %29 = arith.select %26, %24, %28 : vector<8x256xi1>, vector<8x256xf32>
    %30 = arith.addf %29, %1 : vector<8x256xf32>
    %cst_22 = arith.constant 0.000000e+00 : f32
    %31 = vector.broadcast %cst_22 : f32 to vector<8x256xf32>
    %32 = arith.maximumf %30, %31 : vector<8x256xf32>
    %c0_23 = arith.constant 0 : index
    %c0_24 = arith.constant 0 : index
    %c0_25 = arith.constant 0 : index
    %33 = vector.load %arg10[%c0_23, %c0_24, %c0_25] : memref<1x8x256xf32, #tpu.memory_space<vmem>>, vector<1x8x256xf32>
    %34 = vector.shape_cast %33 : vector<1x8x256xf32> to vector<8x256xf32>
    %35 = vector.shape_cast %32 : vector<8x256xf32> to vector<1x8x256xf32>
    tpu.vector_store %arg10[%c0_23, %c0_24, %c0_25], %35 {strides = array<i32>} : memref<1x8x256xf32, #tpu.memory_space<vmem>>, vector<1x8x256xf32>,
    return
  }
  func.func @transform_0(%arg0: i32, %arg1: i32) -> (i32, i32, i32) {
    %c0_i32 = arith.constant 0 : i32
    %c0_i32_0 = arith.constant 0 : i32
    return %arg0, %c0_i32, %arg1 : i32, i32, i32
  }
  func.func @transform_1(%arg0: i32, %arg1: i32) -> (i32, i32) {
    %c0_i32 = arith.constant 0 : i32
    %c0_i32_0 = arith.constant 0 : i32
    %c0_i32_1 = arith.constant 0 : i32
    return %c0_i32, %c0_i32_0 : i32, i32
  }
  func.func @transform_2(%arg0: i32, %arg1: i32) -> (i32, i32) {
    %c0_i32 = arith.constant 0 : i32
    %c0_i32_0 = arith.constant 0 : i32
    %c0_i32_1 = arith.constant 0 : i32
    return %c0_i32, %c0_i32_0 : i32, i32
  }
  func.func @transform_3(%arg0: i32, %arg1: i32) -> (i32, i32) {
    %c0_i32 = arith.constant 0 : i32
    %c0_i32_0 = arith.constant 0 : i32
    %c0_i32_1 = arith.constant 0 : i32
    return %c0_i32, %c0_i32_0 : i32, i32
  }
  func.func @transform_4(%arg0: i32, %arg1: i32) -> (i32, i32) {
    %c0_i32 = arith.constant 0 : i32
    %c0_i32_0 = arith.constant 0 : i32
    %c0_i32_1 = arith.constant 0 : i32
    return %c0_i32, %c0_i32_0 : i32, i32
  }
  func.func @transform_5(%arg0: i32, %arg1: i32) -> (i32, i32) {
    %c0_i32 = arith.constant 0 : i32
    %c0_i32_0 = arith.constant 0 : i32
    %c0_i32_1 = arith.constant 0 : i32
    return %c0_i32, %c0_i32_0 : i32, i32
  }
  func.func @transform_6(%arg0: i32, %arg1: i32) -> (i32, i32) {
    %c0_i32 = arith.constant 0 : i32
    %c0_i32_0 = arith.constant 0 : i32
    %c0_i32_1 = arith.constant 0 : i32
    return %c0_i32, %c0_i32_0 : i32, i32
  }
  func.func @transform_7(%arg0: i32, %arg1: i32) -> (i32, i32) {
    %c0_i32 = arith.constant 0 : i32
    %c0_i32_0 = arith.constant 0 : i32
    %c0_i32_1 = arith.constant 0 : i32
    return %c0_i32, %c0_i32_0 : i32, i32
  }
  func.func @transform_8(%arg0: i32, %arg1: i32) -> (i32, i32, i32) {
    %c0_i32 = arith.constant 0 : i32
    %c0_i32_0 = arith.constant 0 : i32
    return %arg0, %c0_i32, %arg1 : i32, i32, i32
  }
}

</mosaic_0001>

<llo_original>
// kernel: tile.8
$region0: #{tile.8}
  #allocation0 [shape = 's32[1]{0}', space=sflag, size = 0x4, scoped, tag = 'scoped memory for tile.8']
  %s0 = inlined_call_operand.vmem [shape: f32[16], index: 0, kind: input, shape index: {}]
  %s1 = inlined_call_operand.vmem [shape: f32[16,16], index: 1, kind: output, shape index: {}]
  // Predicated region
  $region2: #{tile.8} parent=0 // pred_check
    _
  $region3: #{tile.8} parent=0 // pred_check_branch
    %3 = sbr.rel (0) target = $region5
  $region4: #{tile.8} parent=0 // pred_region
    _
  $region5: #{tile.8} parent=0 // pred_fallthru
    _
  %v4 = vld [vmem:[%s0] ss:$0 sm:$0xff]
  %5 = vst [vmem:[%s1] sm:$0xff] %v4
  %s6 = scalar_lea.vmem %s1, 8
  %7 = vst [vmem:[%s6] sm:$0xff] %v4

// kernel: tile.9
$region0: #{tile.9}
  %s0 = inlined_call_operand.vmem [shape: f32[16,16], index: 0, kind: input, shape index: {}]
  %s1 = inlined_call_operand.vmem [shape: f32[1,256], index: 1, kind: output, shape index: {}]
  $region1: #{tile.9} parent=0
    #allocation0 [shape = 'u8[8192]{0}', space=vmem, size = 0x2000, scoped, tag = 'scoped mem for output reshape']
    %s2 = smov 3
    %v3 = vld [vmem:[%s0] ss:$8 sm:%s2]
    %vm4 = vcmask 130048
    %5 = vst.msk [vmem:[#allocation0] ss:$8 sm:$0x3] %vm4, %v3
    %s6 = scalar_lea.vmem %s0, 7
    %s7 = smov 3
    %v8 = vld [vmem:[%s6] ss:$8 sm:%s7]
    %9 = vrot.lane.b32.xlu0 %v8, 112
    %v10 = vpop.permute.xlu0 %9
    %vm11 = vcmask 1048448
    %12 = vst.msk [vmem:[#allocation0] ss:$8 sm:$0x3] %vm11, %v10
    %s13 = scalar_lea.vmem %s0, 6
    %s14 = smov 3
    %v15 = vld [vmem:[%s13] ss:$8 sm:%s14]
    %16 = vrot.lane.b32.xlu0 %v15, 96
    %v17 = vpop.permute.xlu0 %16
    %vm18 = vcmask 917248
    %19 = vst.msk [vmem:[#allocation0] ss:$8 sm:$0x3] %vm18, %v17
    %s20 = scalar_lea.vmem %s0, 5
    %s21 = smov 3
    %v22 = vld [vmem:[%s20] ss:$8 sm:%s21]
    %23 = vrot.lane.b32.xlu0 %v22, 80
    %v24 = vpop.permute.xlu0 %23
    %vm25 = vcmask 786048
    %26 = vst.msk [vmem:[#allocation0] ss:$8 sm:$0x3] %vm25, %v24
    %s27 = scalar_lea.vmem %s0, 4
    %s28 = smov 3
    %v29 = vld [vmem:[%s27] ss:$8 sm:%s28]
    %30 = vrot.lane.b32.xlu0 %v29, 64
    %v31 = vpop.permute.xlu0 %30
    %vm32 = vcmask 654848
    %33 = vst.msk [vmem:[#allocation0] ss:$8 sm:$0x3] %vm32, %v31
    %s34 = scalar_lea.vmem %s0, 3
    %s35 = smov 3
    %v36 = vld [vmem:[%s34] ss:$8 sm:%s35]
    %37 = vrot.lane.b32.xlu0 %v36, 48
    %v38 = vpop.permute.xlu0 %37
    %vm39 = vcmask 523648
    %40 = vst.msk [vmem:[#allocation0] ss:$8 sm:$0x3] %vm39, %v38
    %s41 = scalar_lea.vmem %s0, 2
    %s42 = smov 3
    %v43 = vld [vmem:[%s41] ss:$8 sm:%s42]
    %44 = vrot.lane.b32.xlu0 %v43, 32
    %v45 = vpop.permute.xlu0 %44
    %vm46 = vcmask 392448
    %47 = vst.msk [vmem:[#allocation0] ss:$8 sm:$0x3] %vm46, %v45
    %s48 = scalar_lea.vmem %s0, 1
    %s49 = smov 3
    %v50 = vld [vmem:[%s48] ss:$8 sm:%s49]
    %51 = vrot.lane.b32.xlu0 %v50, 16
    %v52 = vpop.permute.xlu0 %51
    %vm53 = vcmask 261248
    %54 = vst.msk [vmem:[#allocation0] ss:$8 sm:$0x3] %vm53, %v52
    %s56 = ssub.s32 2, 1
    %v57 = vld [vmem:[#allocation0] sm:%s56]
    %s59 = ssub.s32 2, 1
    %60 = vst [vmem:[%s1] sm:%s59] %v57
    %s61 = scalar_lea.vmem [#allocation0], 8
    %v62 = vld [vmem:[%s61] sm:%s56]
    %s64 = ssub.s32 2, 1
    %s65 = scalar_lea.vmem %s1, 1
    %66 = vst [vmem:[%s65] sm:%s64] %v62

// kernel: s_gcn_forward.1
$region0: #{s_gcn_forward.1}
  #allocation0 [shape = 'u32[]', space=smem, size = 0x4, offset = 0x4, fixed_abs, tag = 'smem constant byte address 0x4 - core index']
  #allocation1 [shape = 'u32[72,128]{1,0:T(1,128)}', space=vmem, size = 0x9000, scoped, tag = 'internal scratch']
  %s0 = inlined_call_operand.vmem [shape: f32[2,8,256], index: 0, kind: input, shape index: {}]
  %s1 = inlined_call_operand.vmem [shape: f32[8,8], index: 1, kind: input, shape index: {}]
  %s2 = inlined_call_operand.vmem [shape: f32[256,256], index: 2, kind: input, shape index: {}]
  %s3 = inlined_call_operand.vmem [shape: f32[8,1], index: 3, kind: input, shape index: {}]
  %s4 = inlined_call_operand.vmem [shape: f32[1,256], index: 4, kind: input, shape index: {}]
  %s5 = inlined_call_operand.vmem [shape: f32[8,1], index: 5, kind: input, shape index: {}]
  %s6 = inlined_call_operand.vmem [shape: f32[8,8], index: 6, kind: input, shape index: {}]
  %s7 = inlined_call_operand.vmem [shape: f32[8,1], index: 7, kind: input, shape index: {}]
  %s8 = inlined_call_operand.vmem [shape: f32[2,8,256], index: 8, kind: output, shape index: {}]
  %s9 = sld [smem:[#allocation0]]
  $region65: #{s_gcn_forward.1} parent=0
    _
  %s11 = ssub.s32 1, %s9
  %s12 = scalar_select 0, %s11, %s9
  loop: start=0, step=1, limit=4
  $region2: #{s_gcn_forward.1} parent=0 // loop_pre_header
    _
  $region3: #{s_gcn_forward.1} parent=0 // loop_header
    %s14 = sphi 0, %s18
    %p15 = scmp.ge.s32.totalorder %s14, 4
    %s21 = sphi 0, %s33
    %s22 = sphi 0, %s29
    %s23 = sphi 0, %s21
    %s24 = sphi 0, %s22
    %s25 = sphi 0, %s23
    %s26 = sphi 0, %s24
    %s38 = sphi 0, %s40
    %s41 = sphi 0, %s38
    %s42 = sphi 0, %s41
    %s58 = sphi 0, %s42
    %s62 = sphi 0, %s62
    %s64 = sphi 0, %s62
    %s65 = sphi 0, %s64
    %s79 = sphi 0, %s65
    %s83 = sphi 0, %s83
    %s85 = sphi 0, %s83
    %s86 = sphi 0, %s85
    %s100 = sphi 0, %s86
    %s104 = sphi 0, %s104
    %s106 = sphi 0, %s104
    %s107 = sphi 0, %s106
    %s121 = sphi 0, %s107
    %s125 = sphi 0, %s125
    %s127 = sphi 0, %s125
    %s128 = sphi 0, %s127
    %s142 = sphi 0, %s128
    %s146 = sphi 0, %s146
    %s148 = sphi 0, %s146
    %s149 = sphi 0, %s148
    %s163 = sphi 0, %s149
    %s167 = sphi 0, %s167
    %s169 = sphi 0, %s167
    %s170 = sphi 0, %s169
    %s184 = sphi 0, %s170
    %s188 = sphi 0, %s188
    %s190 = sphi 0, %s188
    %s191 = sphi 0, %s190
    %s205 = sphi 0, %s191
    %s213 = sphi 0, %s215
    %s216 = sphi 0, %s213
    %s217 = sphi 0, %s216
    %s233 = sphi 0, %s217
  $region4: #{s_gcn_forward.1} parent=0 // loop_header_branch
    %17 = sbr.rel (%p15) target = $region8
  $region5: #{s_gcn_forward.1} parent=0 // loop_body
    %s19 = ssub.s32 %s14, 1
    %s20 = ssub.s32 %s14, 2
    %s27 = sadd.s32 1, %s22
    %p28 = scmp.ge.s32.totalorder %s27, 1
    %s29 = scalar_select %p28, 0, %s27
    %s30 = sadd.s32 1, %s21
    %s31 = scalar_select %p28, %s30, %s21
    %p32 = scmp.ge.s32.totalorder %s31, 2
    %s33 = scalar_select %p32, 0, %s31
    %s34 = ssub.s32 %s21, %s33
    %s35 = ssub.s32 %s22, %s29
    %s36 = sor.u32 %s34, %s35
    %p37 = scmp.eq.s32.totalorder %s36, 0
    %s39 = sadd.s32 %s38, 1
    %s40 = scalar_select %p37, %s38, %s39
    %p43 = pneg %p37
    %p44 = scmp.eq.s32.totalorder %s14, 1
    %p45 = por %p43, %p44
    %p46 = scmp.ne.s32.totalorder %s38, %s41
    %p47 = scmp.eq.s32.totalorder %s14, 0
    %p48 = por %p46, %p47
    %p49 = scmp.ne.s32.totalorder %s38, %s41
    %p50 = scmp.eq.s32.totalorder %s19, 1
    %p51 = por %p49, %p50
    %p52 = scmp.ne.s32.totalorder %s41, %s42
    %p53 = scmp.eq.s32.totalorder %s19, 0
    %p54 = por %p52, %p53
    %p55 = scmp.ne.s32.totalorder %s41, %s42
    %p56 = scmp.eq.s32.totalorder %s20, 1
    %p57 = por %p55, %p56
    %p59 = scmp.ne.s32.totalorder %s42, %s58
    %p60 = scmp.eq.s32.totalorder %s20, 0
    %p61 = por %p59, %p60
    %s63 = sadd.s32 %s62, 1
    %p66 = scmp.eq.s32.totalorder %s14, 1
    %p67 = scmp.ne.s32.totalorder %s62, %s64
    %p68 = scmp.eq.s32.totalorder %s14, 0
    %p69 = por %p67, %p68
    %p70 = scmp.ne.s32.totalorder %s62, %s64
    %p71 = scmp.eq.s32.totalorder %s19, 1
    %p72 = por %p70, %p71
    %p73 = scmp.ne.s32.totalorder %s64, %s65
    %p74 = scmp.eq.s32.totalorder %s19, 0
    %p75 = por %p73, %p74
    %p76 = scmp.ne.s32.totalorder %s64, %s65
    %p77 = scmp.eq.s32.totalorder %s20, 1
    %p78 = por %p76, %p77
    %p80 = scmp.ne.s32.totalorder %s65, %s79
    %p81 = scmp.eq.s32.totalorder %s20, 0
    %p82 = por %p80, %p81
    %s84 = sadd.s32 %s83, 1
    %p87 = scmp.eq.s32.totalorder %s14, 1
    %p88 = scmp.ne.s32.totalorder %s83, %s85
    %p89 = scmp.eq.s32.totalorder %s14, 0
    %p90 = por %p88, %p89
    %p91 = scmp.ne.s32.totalorder %s83, %s85
    %p92 = scmp.eq.s32.totalorder %s19, 1
    %p93 = por %p91, %p92
    %p94 = scmp.ne.s32.totalorder %s85, %s86
    %p95 = scmp.eq.s32.totalorder %s19, 0
    %p96 = por %p94, %p95
    %p97 = scmp.ne.s32.totalorder %s85, %s86
    %p98 = scmp.eq.s32.totalorder %s20, 1
    %p99 = por %p97, %p98
    %p101 = scmp.ne.s32.totalorder %s86, %s100
    %p102 = scmp.eq.s32.totalorder %s20, 0
    %p103 = por %p101, %p102
    %s105 = sadd.s32 %s104, 1
    %p108 = scmp.eq.s32.totalorder %s14, 1
    %p109 = scmp.ne.s32.totalorder %s104, %s106
    %p110 = scmp.eq.s32.totalorder %s14, 0
    %p111 = por %p109, %p110
    %p112 = scmp.ne.s32.totalorder %s104, %s106
    %p113 = scmp.eq.s32.totalorder %s19, 1
    %p114 = por %p112, %p113
    %p115 = scmp.ne.s32.totalorder %s106, %s107
    %p116 = scmp.eq.s32.totalorder %s19, 0
    %p117 = por %p115, %p116
    %p118 = scmp.ne.s32.totalorder %s106, %s107
    %p119 = scmp.eq.s32.totalorder %s20, 1
    %p120 = por %p118, %p119
    %p122 = scmp.ne.s32.totalorder %s107, %s121
    %p123 = scmp.eq.s32.totalorder %s20, 0
    %p124 = por %p122, %p123
    %s126 = sadd.s32 %s125, 1
    %p129 = scmp.eq.s32.totalorder %s14, 1
    %p130 = scmp.ne.s32.totalorder %s125, %s127
    %p131 = scmp.eq.s32.totalorder %s14, 0
    %p132 = por %p130, %p131
    %p133 = scmp.ne.s32.totalorder %s125, %s127
    %p134 = scmp.eq.s32.totalorder %s19, 1
    %p135 = por %p133, %p134
    %p136 = scmp.ne.s32.totalorder %s127, %s128
    %p137 = scmp.eq.s32.totalorder %s19, 0
    %p138 = por %p136, %p137
    %p139 = scmp.ne.s32.totalorder %s127, %s128
    %p140 = scmp.eq.s32.totalorder %s20, 1
    %p141 = por %p139, %p140
    %p143 = scmp.ne.s32.totalorder %s128, %s142
    %p144 = scmp.eq.s32.totalorder %s20, 0
    %p145 = por %p143, %p144
    %s147 = sadd.s32 %s146, 1
    %p150 = scmp.eq.s32.totalorder %s14, 1
    %p151 = scmp.ne.s32.totalorder %s146, %s148
    %p152 = scmp.eq.s32.totalorder %s14, 0
    %p153 = por %p151, %p152
    %p154 = scmp.ne.s32.totalorder %s146, %s148
    %p155 = scmp.eq.s32.totalorder %s19, 1
    %p156 = por %p154, %p155
    %p157 = scmp.ne.s32.totalorder %s148, %s149
    %p158 = scmp.eq.s32.totalorder %s19, 0
    %p159 = por %p157, %p158
    %p160 = scmp.ne.s32.totalorder %s148, %s149
    %p161 = scmp.eq.s32.totalorder %s20, 1
    %p162 = por %p160, %p161
    %p164 = scmp.ne.s32.totalorder %s149, %s163
    %p165 = scmp.eq.s32.totalorder %s20, 0
    %p166 = por %p164, %p165
    %s168 = sadd.s32 %s167, 1
    %p171 = scmp.eq.s32.totalorder %s14, 1
    %p172 = scmp.ne.s32.totalorder %s167, %s169
    %p173 = scmp.eq.s32.totalorder %s14, 0
    %p174 = por %p172, %p173
    %p175 = scmp.ne.s32.totalorder %s167, %s169
    %p176 = scmp.eq.s32.totalorder %s19, 1
    %p177 = por %p175, %p176
    %p178 = scmp.ne.s32.totalorder %s169, %s170
    %p179 = scmp.eq.s32.totalorder %s19, 0
    %p180 = por %p178, %p179
    %p181 = scmp.ne.s32.totalorder %s169, %s170
    %p182 = scmp.eq.s32.totalorder %s20, 1
    %p183 = por %p181, %p182
    %p185 = scmp.ne.s32.totalorder %s170, %s184
    %p186 = scmp.eq.s32.totalorder %s20, 0
    %p187 = por %p185, %p186
    %s189 = sadd.s32 %s188, 1
    %p192 = scmp.eq.s32.totalorder %s14, 1
    %p193 = scmp.ne.s32.totalorder %s188, %s190
    %p194 = scmp.eq.s32.totalorder %s14, 0
    %p195 = por %p193, %p194
    %p196 = scmp.ne.s32.totalorder %s188, %s190
    %p197 = scmp.eq.s32.totalorder %s19, 1
    %p198 = por %p196, %p197
    %p199 = scmp.ne.s32.totalorder %s190, %s191
    %p200 = scmp.eq.s32.totalorder %s19, 0
    %p201 = por %p199, %p200
    %p202 = scmp.ne.s32.totalorder %s190, %s191
    %p203 = scmp.eq.s32.totalorder %s20, 1
    %p204 = por %p202, %p203
    %p206 = scmp.ne.s32.totalorder %s191, %s205
    %p207 = scmp.eq.s32.totalorder %s20, 0
    %p208 = por %p206, %p207
    %s209 = ssub.s32 %s21, %s33
    %s210 = ssub.s32 %s22, %s29
    %s211 = sor.u32 %s209, %s210
    %p212 = scmp.eq.s32.totalorder %s211, 0
    %s214 = sadd.s32 %s213, 1
    %s215 = scalar_select %p212, %s213, %s214
    %p218 = pneg %p212
    %p219 = scmp.eq.s32.totalorder %s14, 1
    %p220 = por %p218, %p219
    %p221 = scmp.ne.s32.totalorder %s213, %s216
    %p222 = scmp.eq.s32.totalorder %s14, 0
    %p223 = por %p221, %p222
    %p224 = scmp.ne.s32.totalorder %s213, %s216
    %p225 = scmp.eq.s32.totalorder %s19, 1
    %p226 = por %p224, %p225
    %p227 = scmp.ne.s32.totalorder %s216, %s217
    %p228 = scmp.eq.s32.totalorder %s19, 0
    %p229 = por %p227, %p228
    %p230 = scmp.ne.s32.totalorder %s216, %s217
    %p231 = scmp.eq.s32.totalorder %s20, 1
    %p232 = por %p230, %p231
    %p234 = scmp.ne.s32.totalorder %s217, %s233
    %p235 = scmp.eq.s32.totalorder %s20, 0
    %p236 = por %p234, %p235
    %p237 = scmp.le.s32.totalorder 1, %s14
    %p238 = scmp.lt.s32.totalorder %s14, 3
    %p239 = pnand %p237, %p238
    %p240 = pneg %p239
    // Predicated region
    $region9: #{s_gcn_forward.1} parent=5 // pred_check
      _
    $region10: #{s_gcn_forward.1} parent=5 // pred_check_branch
      %242 = sbr.rel (%p239) target = $region12
    $region11: #{s_gcn_forward.1} parent=5 // pred_region
      %s243 = ssub.s32 %s14, 1
      // Predicated region
      $region13: #{s_gcn_forward.1} parent=11 // pred_check
        %p244 = pneg %p75
      $region14: #{s_gcn_forward.1} parent=11 // pred_check_branch
        %246 = sbr.rel (%p244) target = $region16
      $region15: #{s_gcn_forward.1} parent=11 // pred_region
        _
      $region16: #{s_gcn_forward.1} parent=11 // pred_fallthru
        _
      // Predicated region
      $region17: #{s_gcn_forward.1} parent=11 // pred_check
        %p247 = pneg %p96
      $region18: #{s_gcn_forward.1} parent=11 // pred_check_branch
        %249 = sbr.rel (%p247) target = $region20
      $region19: #{s_gcn_forward.1} parent=11 // pred_region
        _
      $region20: #{s_gcn_forward.1} parent=11 // pred_fallthru
        _
      // Predicated region
      $region21: #{s_gcn_forward.1} parent=11 // pred_check
        %p250 = pneg %p117
      $region22: #{s_gcn_forward.1} parent=11 // pred_check_branch
        %252 = sbr.rel (%p250) target = $region24
      $region23: #{s_gcn_forward.1} parent=11 // pred_region
        _
      $region24: #{s_gcn_forward.1} parent=11 // pred_fallthru
        _
      // Predicated region
      $region25: #{s_gcn_forward.1} parent=11 // pred_check
        %p253 = pneg %p138
      $region26: #{s_gcn_forward.1} parent=11 // pred_check_branch
        %255 = sbr.rel (%p253) target = $region28
      $region27: #{s_gcn_forward.1} parent=11 // pred_region
        _
      $region28: #{s_gcn_forward.1} parent=11 // pred_fallthru
        _
      // Predicated region
      $region29: #{s_gcn_forward.1} parent=11 // pred_check
        %p256 = pneg %p159
      $region30: #{s_gcn_forward.1} parent=11 // pred_check_branch
        %258 = sbr.rel (%p256) target = $region32
      $region31: #{s_gcn_forward.1} parent=11 // pred_region
        _
      $region32: #{s_gcn_forward.1} parent=11 // pred_fallthru
        _
      // Predicated region
      $region33: #{s_gcn_forward.1} parent=11 // pred_check
        %p259 = pneg %p180
      $region34: #{s_gcn_forward.1} parent=11 // pred_check_branch
        %261 = sbr.rel (%p259) target = $region36
      $region35: #{s_gcn_forward.1} parent=11 // pred_region
        _
      $region36: #{s_gcn_forward.1} parent=11 // pred_fallthru
        _
      // Predicated region
      $region37: #{s_gcn_forward.1} parent=11 // pred_check
        %p262 = pneg %p201
      $region38: #{s_gcn_forward.1} parent=11 // pred_check_branch
        %264 = sbr.rel (%p262) target = $region40
      $region39: #{s_gcn_forward.1} parent=11 // pred_region
        _
      $region40: #{s_gcn_forward.1} parent=11 // pred_fallthru
        _
    $region12: #{s_gcn_forward.1} parent=5 // pred_fallthru
      _
    %p265 = scmp.lt.s32.totalorder %s14, 2
    // Predicated region
    $region41: #{s_gcn_forward.1} parent=5 // pred_check
      %p266 = pneg %p265
    $region42: #{s_gcn_forward.1} parent=5 // pred_check_branch
      %268 = sbr.rel (%p266) target = $region44
    $region43: #{s_gcn_forward.1} parent=5 // pred_region
      // Predicated region
      $region45: #{s_gcn_forward.1} parent=43 // pred_check
        %p269 = pneg %p48
      $region46: #{s_gcn_forward.1} parent=43 // pred_check_branch
        %271 = sbr.rel (%p269) target = $region48
      $region47: #{s_gcn_forward.1} parent=43 // pred_region
        %s272 = smul.u32 2, %s22
        %p273 = scmp.lt.s32.totalorder %s21, 1
        %s274 = scalar_select %p273, %s21, 1
        %p275 = scmp.lt.s32.totalorder %s272, 1
        %s276 = scalar_select %p275, %s272, 1
        %s277 = smul.addr %s274, 2
        %s278 = sadd.s32 %s276, %s277
        %s279 = smul.addr %s278, 8
        %s280 = scalar_lea.vmem %s0, %s279
        %s281 = smul.u32 2, %s22
      $region48: #{s_gcn_forward.1} parent=43 // pred_fallthru
        _
    $region44: #{s_gcn_forward.1} parent=5 // pred_fallthru
      _
    %p282 = scmp.le.s32.totalorder 1, %s14
    %p283 = scmp.lt.s32.totalorder %s14, 3
    %p284 = pnand %p282, %p283
    %p285 = pneg %p284
    // Predicated region
    $region49: #{s_gcn_forward.1} parent=5 // pred_check
      _
    $region50: #{s_gcn_forward.1} parent=5 // pred_check_branch
      %287 = sbr.rel (%p284) target = $region52
    $region51: #{s_gcn_forward.1} parent=5 // pred_region
      %s288 = ssub.s32 %s14, 1
      %s289 = smul.u32 2, %s24
      %p290 = scmp.lt.s32.totalorder %s23, 1
      %s291 = scalar_select %p290, %s23, 1
      %p292 = scmp.lt.s32.totalorder %s289, 1
      %s293 = scalar_select %p292, %s289, 1
      %s294 = smul.addr %s291, 2
      %s295 = sadd.s32 %s293, %s294
      %s296 = smul.addr %s295, 8
      %s297 = scalar_lea.vmem %s0, %s296
      %p298 = pneg %p54
      %p299 = pneg %p51
      %p300 = pneg %p75
      %p301 = pneg %p72
      %p302 = pneg %p96
      %p303 = pneg %p93
      %p304 = pneg %p117
      %p305 = pneg %p114
      %p306 = pneg %p138
      %p307 = pneg %p135
      %p308 = pneg %p159
      %p309 = pneg %p156
      %p310 = pneg %p180
      %p311 = pneg %p177
      %p312 = pneg %p201
      %p313 = pneg %p198
      %p314 = pneg %p229
      %p315 = pneg %p226
      %s316 = smul.u32 2, %s24
      %p317 = scmp.lt.s32.totalorder %s23, 1
      %s318 = scalar_select %p317, %s23, 1
      %p319 = scmp.lt.s32.totalorder %s316, 1
      %s320 = scalar_select %p319, %s316, 1
      %s321 = smul.addr %s318, 2
      %s322 = sadd.s32 %s320, %s321
      %s323 = smul.addr %s322, 8
      %s324 = scalar_lea.vmem %s8, %s323
      %s325 = smul.u32 2, %s24
      %p326 = scmp.lt.s32.totalorder %s23, 1
      %s327 = scalar_select %p326, %s23, 1
      %p328 = scmp.lt.s32.totalorder %s325, 1
      %s329 = scalar_select %p328, %s325, 1
      %s330 = smul.addr %s327, 2
      %s331 = sadd.s32 %s329, %s330
      %s332 = smul.addr %s331, 8
      %s333 = scalar_lea.vmem %s0, %s332
      %s334 = smul.u32 2, %s24
      %s335 = smul.u32 2, %s24
      %p336 = scmp.lt.s32.totalorder %s23, 1
      %s337 = scalar_select %p336, %s23, 1
      %p338 = scmp.lt.s32.totalorder %s335, 1
      %s339 = scalar_select %p338, %s335, 1
      %s340 = smul.addr %s337, 2
      %s341 = sadd.s32 %s339, %s340
      %s342 = smul.addr %s341, 8
      %s343 = scalar_lea.vmem %s8, %s342
      %s344 = smul.u32 2, %s24
      %v345 = vld [vmem:[%s333] sm:$0xff]
      %v346 = vld [vmem:[%s333 + $0x8] sm:$0xff]
      %v347 = vld [vmem:[%s1] sm:$0xff]
      %vm348 = vcmask 64512
      %v350 = vsel %vm348, %v347, 0
      %352 = vmatpush.msra.mxu0 0.0
      %353 = vmatpush.msra.mxu0 0.0
      %354 = vmatpush.msra.mxu0 0.0
      %355 = vmatpush.msra.mxu0 0.0
      %356 = vmatpush.msra.mxu0 0.0
      %357 = vmatpush.msra.mxu0 0.0
      %358 = vmatpush.msra.mxu0 0.0
      %359 = vmatpush.msra.mxu0 0.0
      %360 = vmatpush.msra.mxu0 0.0
      %361 = vmatpush.msra.mxu0 0.0
      %362 = vmatpush.msra.mxu0 0.0
      %363 = vmatpush.msra.mxu0 0.0
      %364 = vmatpush.msra.mxu0 0.0
      %365 = vmatpush.msra.mxu0 0.0
      %366 = vmatpush.msra.mxu0 0.0
      %v367 = vand.u32 %v345, 4294901760
      %368 = vmatpush.msra.mxu0 %v367
      %v369 = vand.u32 %v350, 4294901760
      %v370 = vsub.f32 %v350, %v369
      %v371 = vand.u32 %v370, 4294901760
      %v372 = vsub.f32 %v370, %v371
      %v373 = vand.u32 %v372, 4294901760
      %374 = vmatmul.f32.gmra.mxu0 %v373
      %v375 = vpop.f32.mrf.mxu0
      %v376 = vadd.f32 0.0, %v375
      %377 = vdwg.mxu0
      %378 = vmatpush.msra.mxu0 0.0
      %379 = vmatpush.msra.mxu0 0.0
      %380 = vmatpush.msra.mxu0 0.0
      %381 = vmatpush.msra.mxu0 0.0
      %382 = vmatpush.msra.mxu0 0.0
      %383 = vmatpush.msra.mxu0 0.0
      %384 = vmatpush.msra.mxu0 0.0
      %385 = vmatpush.msra.mxu0 0.0
      %386 = vmatpush.msra.mxu0 0.0
      %387 = vmatpush.msra.mxu0 0.0
      %388 = vmatpush.msra.mxu0 0.0
      %389 = vmatpush.msra.mxu0 0.0
      %390 = vmatpush.msra.mxu0 0.0
      %391 = vmatpush.msra.mxu0 0.0
      %392 = vmatpush.msra.mxu0 0.0
      %v393 = vand.u32 %v345, 4294901760
      %v394 = vsub.f32 %v345, %v393
      %v395 = vand.u32 %v394, 4294901760
      %v396 = vsub.f32 %v394, %v395
      %v397 = vand.u32 %v396, 4294901760
      %398 = vmatpush.msra.mxu0 %v397
      %v399 = vand.u32 %v350, 4294901760
      %400 = vmatmul.f32.gmra.mxu0 %v399
      %v401 = vpop.f32.mrf.mxu0
      %v402 = vadd.f32 %v376, %v401
      %403 = vdwg.mxu0
      %404 = vmatpush.msra.mxu0 0.0
      %405 = vmatpush.msra.mxu0 0.0
      %406 = vmatpush.msra.mxu0 0.0
      %407 = vmatpush.msra.mxu0 0.0
      %408 = vmatpush.msra.mxu0 0.0
      %409 = vmatpush.msra.mxu0 0.0
      %410 = vmatpush.msra.mxu0 0.0
      %411 = vmatpush.msra.mxu0 0.0
      %412 = vmatpush.msra.mxu0 0.0
      %413 = vmatpush.msra.mxu0 0.0
      %414 = vmatpush.msra.mxu0 0.0
      %415 = vmatpush.msra.mxu0 0.0
      %416 = vmatpush.msra.mxu0 0.0
      %417 = vmatpush.msra.mxu0 0.0
      %418 = vmatpush.msra.mxu0 0.0
      %v419 = vand.u32 %v345, 4294901760
      %v420 = vsub.f32 %v345, %v419
      %421 = vmatpush.msra.mxu0 %v420
      %v422 = vand.u32 %v350, 4294901760
      %v423 = vsub.f32 %v350, %v422
      %424 = vmatmul.f32.gmra.mxu0 %v423
      %v425 = vpop.f32.mrf.mxu0
      %v426 = vadd.f32 %v402, %v425
      %427 = vdwg.mxu0
      %428 = vmatpush.msra.mxu0 0.0
      %429 = vmatpush.msra.mxu0 0.0
      %430 = vmatpush.msra.mxu0 0.0
      %431 = vmatpush.msra.mxu0 0.0
      %432 = vmatpush.msra.mxu0 0.0
      %433 = vmatpush.msra.mxu0 0.0
      %434 = vmatpush.msra.mxu0 0.0
      %435 = vmatpush.msra.mxu0 0.0
      %436 = vmatpush.msra.mxu0 0.0
      %437 = vmatpush.msra.mxu0 0.0
      %438 = vmatpush.msra.mxu0 0.0
      %439 = vmatpush.msra.mxu0 0.0
      %440 = vmatpush.msra.mxu0 0.0
      %441 = vmatpush.msra.mxu0 0.0
      %442 = vmatpush.msra.mxu0 0.0
      %v443 = vand.u32 %v345, 4294901760
      %444 = vmatpush.msra.mxu0 %v443
      %v445 = vand.u32 %v350, 4294901760
      %v446 = vsub.f32 %v350, %v445
      %v447 = vand.u32 %v446, 4294901760
      %448 = vmatmul.f32.gmra.mxu0 %v447
      %v449 = vpop.f32.mrf.mxu0
      %v450 = vadd.f32 %v426, %v449
      %451 = vdwg.mxu0
      %452 = vmatpush.msra.mxu0 0.0
      %453 = vmatpush.msra.mxu0 0.0
      %454 = vmatpush.msra.mxu0 0.0
      %455 = vmatpush.msra.mxu0 0.0
      %456 = vmatpush.msra.mxu0 0.0
      %457 = vmatpush.msra.mxu0 0.0
      %458 = vmatpush.msra.mxu0 0.0
      %459 = vmatpush.msra.mxu0 0.0
      %460 = vmatpush.msra.mxu0 0.0
      %461 = vmatpush.msra.mxu0 0.0
      %462 = vmatpush.msra.mxu0 0.0
      %463 = vmatpush.msra.mxu0 0.0
      %464 = vmatpush.msra.mxu0 0.0
      %465 = vmatpush.msra.mxu0 0.0
      %466 = vmatpush.msra.mxu0 0.0
      %v467 = vand.u32 %v345, 4294901760
      %v468 = vsub.f32 %v345, %v467
      %v469 = vand.u32 %v468, 4294901760
      %470 = vmatpush.msra.mxu0 %v469
      %v471 = vand.u32 %v350, 4294901760
      %472 = vmatmul.f32.gmra.mxu0 %v471
      %v473 = vpop.f32.mrf.mxu0
      %v474 = vadd.f32 %v450, %v473
      %475 = vdwg.mxu0
      %476 = vmatpush.msra.mxu0 0.0
      %477 = vmatpush.msra.mxu0 0.0
      %478 = vmatpush.msra.mxu0 0.0
      %479 = vmatpush.msra.mxu0 0.0
      %480 = vmatpush.msra.mxu0 0.0
      %481 = vmatpush.msra.mxu0 0.0
      %482 = vmatpush.msra.mxu0 0.0
      %483 = vmatpush.msra.mxu0 0.0
      %484 = vmatpush.msra.mxu0 0.0
      %485 = vmatpush.msra.mxu0 0.0
      %486 = vmatpush.msra.mxu0 0.0
      %487 = vmatpush.msra.mxu0 0.0
      %488 = vmatpush.msra.mxu0 0.0
      %489 = vmatpush.msra.mxu0 0.0
      %490 = vmatpush.msra.mxu0 0.0
      %v491 = vand.u32 %v345, 4294901760
      %492 = vmatpush.msra.mxu0 %v491
      %v493 = vand.u32 %v350, 4294901760
      %494 = vmatmul.f32.gmra.mxu0 %v493
      %v495 = vpop.f32.mrf.mxu0
      %v496 = vadd.f32 %v474, %v495
      %497 = vdwg.mxu0
      %498 = vmatpush.msra.mxu0 0.0
      %499 = vmatpush.msra.mxu0 0.0
      %500 = vmatpush.msra.mxu0 0.0
      %501 = vmatpush.msra.mxu0 0.0
      %502 = vmatpush.msra.mxu0 0.0
      %503 = vmatpush.msra.mxu0 0.0
      %504 = vmatpush.msra.mxu0 0.0
      %505 = vmatpush.msra.mxu0 0.0
      %506 = vmatpush.msra.mxu0 0.0
      %507 = vmatpush.msra.mxu0 0.0
      %508 = vmatpush.msra.mxu0 0.0
      %509 = vmatpush.msra.mxu0 0.0
      %510 = vmatpush.msra.mxu0 0.0
      %511 = vmatpush.msra.mxu0 0.0
      %512 = vmatpush.msra.mxu0 0.0
      %v513 = vand.u32 %v346, 4294901760
      %514 = vmatpush.msra.mxu0 %v513
      %v515 = vand.u32 %v350, 4294901760
      %v516 = vsub.f32 %v350, %v515
      %v517 = vand.u32 %v516, 4294901760
      %v518 = vsub.f32 %v516, %v517
      %v519 = vand.u32 %v518, 4294901760
      %520 = vmatmul.f32.gmra.mxu0 %v519
      %v521 = vpop.f32.mrf.mxu0
      %v522 = vadd.f32 0.0, %v521
      %523 = vdwg.mxu0
      %524 = vmatpush.msra.mxu0 0.0
      %525 = vmatpush.msra.mxu0 0.0
      %526 = vmatpush.msra.mxu0 0.0
      %527 = vmatpush.msra.mxu0 0.0
      %528 = vmatpush.msra.mxu0 0.0
      %529 = vmatpush.msra.mxu0 0.0
      %530 = vmatpush.msra.mxu0 0.0
      %531 = vmatpush.msra.mxu0 0.0
      %532 = vmatpush.msra.mxu0 0.0
      %533 = vmatpush.msra.mxu0 0.0
      %534 = vmatpush.msra.mxu0 0.0
      %535 = vmatpush.msra.mxu0 0.0
      %536 = vmatpush.msra.mxu0 0.0
      %537 = vmatpush.msra.mxu0 0.0
      %538 = vmatpush.msra.mxu0 0.0
      %v539 = vand.u32 %v346, 4294901760
      %v540 = vsub.f32 %v346, %v539
      %v541 = vand.u32 %v540, 4294901760
      %v542 = vsub.f32 %v540, %v541
      %v543 = vand.u32 %v542, 4294901760
      %544 = vmatpush.msra.mxu0 %v543
      %v545 = vand.u32 %v350, 4294901760
      %546 = vmatmul.f32.gmra.mxu0 %v545
      %v547 = vpop.f32.mrf.mxu0
      %v548 = vadd.f32 %v522, %v547
      %549 = vdwg.mxu0
      %550 = vmatpush.msra.mxu0 0.0
      %551 = vmatpush.msra.mxu0 0.0
      %552 = vmatpush.msra.mxu0 0.0
      %553 = vmatpush.msra.mxu0 0.0
      %554 = vmatpush.msra.mxu0 0.0
      %555 = vmatpush.msra.mxu0 0.0
      %556 = vmatpush.msra.mxu0 0.0
      %557 = vmatpush.msra.mxu0 0.0
      %558 = vmatpush.msra.mxu0 0.0
      %559 = vmatpush.msra.mxu0 0.0
      %560 = vmatpush.msra.mxu0 0.0
      %561 = vmatpush.msra.mxu0 0.0
      %562 = vmatpush.msra.mxu0 0.0
      %563 = vmatpush.msra.mxu0 0.0
      %564 = vmatpush.msra.mxu0 0.0
      %v565 = vand.u32 %v346, 4294901760
      %v566 = vsub.f32 %v346, %v565
      %567 = vmatpush.msra.mxu0 %v566
      %v568 = vand.u32 %v350, 4294901760
      %v569 = vsub.f32 %v350, %v568
      %570 = vmatmul.f32.gmra.mxu0 %v569
      %v571 = vpop.f32.mrf.mxu0
      %v572 = vadd.f32 %v548, %v571
      %573 = vdwg.mxu0
      %574 = vmatpush.msra.mxu0 0.0
      %575 = vmatpush.msra.mxu0 0.0
      %576 = vmatpush.msra.mxu0 0.0
      %577 = vmatpush.msra.mxu0 0.0
      %578 = vmatpush.msra.mxu0 0.0
      %579 = vmatpush.msra.mxu0 0.0
      %580 = vmatpush.msra.mxu0 0.0
      %581 = vmatpush.msra.mxu0 0.0
      %582 = vmatpush.msra.mxu0 0.0
      %583 = vmatpush.msra.mxu0 0.0
      %584 = vmatpush.msra.mxu0 0.0
      %585 = vmatpush.msra.mxu0 0.0
      %586 = vmatpush.msra.mxu0 0.0
      %587 = vmatpush.msra.mxu0 0.0
      %588 = vmatpush.msra.mxu0 0.0
      %v589 = vand.u32 %v346, 4294901760
      %590 = vmatpush.msra.mxu0 %v589
      %v591 = vand.u32 %v350, 4294901760
      %v592 = vsub.f32 %v350, %v591
      %v593 = vand.u32 %v592, 4294901760
      %594 = vmatmul.f32.gmra.mxu0 %v593
      %v595 = vpop.f32.mrf.mxu0
      %v596 = vadd.f32 %v572, %v595
      %597 = vdwg.mxu0
      %598 = vmatpush.msra.mxu0 0.0
      %599 = vmatpush.msra.mxu0 0.0
      %600 = vmatpush.msra.mxu0 0.0
      %601 = vmatpush.msra.mxu0 0.0
      %602 = vmatpush.msra.mxu0 0.0
      %603 = vmatpush.msra.mxu0 0.0
      %604 = vmatpush.msra.mxu0 0.0
      %605 = vmatpush.msra.mxu0 0.0
      %606 = vmatpush.msra.mxu0 0.0
      %607 = vmatpush.msra.mxu0 0.0
      %608 = vmatpush.msra.mxu0 0.0
      %609 = vmatpush.msra.mxu0 0.0
      %610 = vmatpush.msra.mxu0 0.0
      %611 = vmatpush.msra.mxu0 0.0
      %612 = vmatpush.msra.mxu0 0.0
      %v613 = vand.u32 %v346, 4294901760
      %v614 = vsub.f32 %v346, %v613
      %v615 = vand.u32 %v614, 4294901760
      %616 = vmatpush.msra.mxu0 %v615
      %v617 = vand.u32 %v350, 4294901760
      %618 = vmatmul.f32.gmra.mxu0 %v617
      %v619 = vpop.f32.mrf.mxu0
      %v620 = vadd.f32 %v596, %v619
      %621 = vdwg.mxu0
      %622 = vmatpush.msra.mxu0 0.0
      %623 = vmatpush.msra.mxu0 0.0
      %624 = vmatpush.msra.mxu0 0.0
      %625 = vmatpush.msra.mxu0 0.0
      %626 = vmatpush.msra.mxu0 0.0
      %627 = vmatpush.msra.mxu0 0.0
      %628 = vmatpush.msra.mxu0 0.0
      %629 = vmatpush.msra.mxu0 0.0
      %630 = vmatpush.msra.mxu0 0.0
      %631 = vmatpush.msra.mxu0 0.0
      %632 = vmatpush.msra.mxu0 0.0
      %633 = vmatpush.msra.mxu0 0.0
      %634 = vmatpush.msra.mxu0 0.0
      %635 = vmatpush.msra.mxu0 0.0
      %636 = vmatpush.msra.mxu0 0.0
      %v637 = vand.u32 %v346, 4294901760
      %638 = vmatpush.msra.mxu0 %v637
      %v639 = vand.u32 %v350, 4294901760
      %640 = vmatmul.f32.gmra.mxu0 %v639
      %v641 = vpop.f32.mrf.mxu0
      %v642 = vadd.f32 %v620, %v641
      %643 = vdwg.mxu0
      %v644 = vld [vmem:[%s2] sm:$0xff]
      %v645 = vld [vmem:[%s2 + $0x8] sm:$0xff]
      %v646 = vld [vmem:[%s2 + $0x10] sm:$0xff]
      %v647 = vld [vmem:[%s2 + $0x18] sm:$0xff]
      %v648 = vld [vmem:[%s2 + $0x20] sm:$0xff]
      %v649 = vld [vmem:[%s2 + $0x28] sm:$0xff]
      %v650 = vld [vmem:[%s2 + $0x30] sm:$0xff]
      %v651 = vld [vmem:[%s2 + $0x38] sm:$0xff]
      %v652 = vld [vmem:[%s2 + $0x40] sm:$0xff]
      %v653 = vld [vmem:[%s2 + $0x48] sm:$0xff]
      %v654 = vld [vmem:[%s2 + $0x50] sm:$0xff]
      %v655 = vld [vmem:[%s2 + $0x58] sm:$0xff]
      %v656 = vld [vmem:[%s2 + $0x60] sm:$0xff]
      %v657 = vld [vmem:[%s2 + $0x68] sm:$0xff]
      %v658 = vld [vmem:[%s2 + $0x70] sm:$0xff]
      %v659 = vld [vmem:[%s2 + $0x78] sm:$0xff]
      %v660 = vld [vmem:[%s2 + $0x80] sm:$0xff]
      %v661 = vld [vmem:[%s2 + $0x88] sm:$0xff]
      %v662 = vld [vmem:[%s2 + $0x90] sm:$0xff]
      %v663 = vld [vmem:[%s2 + $0x98] sm:$0xff]
      %v664 = vld [vmem:[%s2 + $0xa0] sm:$0xff]
      %v665 = vld [vmem:[%s2 + $0xa8] sm:$0xff]
      %v666 = vld [vmem:[%s2 + $0xb0] sm:$0xff]
      %v667 = vld [vmem:[%s2 + $0xb8] sm:$0xff]
      %v668 = vld [vmem:[%s2 + $0xc0] sm:$0xff]
      %v669 = vld [vmem:[%s2 + $0xc8] sm:$0xff]
      %v670 = vld [vmem:[%s2 + $0xd0] sm:$0xff]
      %v671 = vld [vmem:[%s2 + $0xd8] sm:$0xff]
      %v672 = vld [vmem:[%s2 + $0xe0] sm:$0xff]
      %v673 = vld [vmem:[%s2 + $0xe8] sm:$0xff]
      %v674 = vld [vmem:[%s2 + $0xf0] sm:$0xff]
      %v675 = vld [vmem:[%s2 + $0xf8] sm:$0xff]
      %v676 = vld [vmem:[%s2 + $0x100] sm:$0xff]
      %v677 = vld [vmem:[%s2 + $0x108] sm:$0xff]
      %v678 = vld [vmem:[%s2 + $0x110] sm:$0xff]
      %v679 = vld [vmem:[%s2 + $0x118] sm:$0xff]
      %v680 = vld [vmem:[%s2 + $0x120] sm:$0xff]
      %v681 = vld [vmem:[%s2 + $0x128] sm:$0xff]
      %v682 = vld [vmem:[%s2 + $0x130] sm:$0xff]
      %v683 = vld [vmem:[%s2 + $0x138] sm:$0xff]
      %v684 = vld [vmem:[%s2 + $0x140] sm:$0xff]
      %v685 = vld [vmem:[%s2 + $0x148] sm:$0xff]
      %v686 = vld [vmem:[%s2 + $0x150] sm:$0xff]
      %v687 = vld [vmem:[%s2 + $0x158] sm:$0xff]
      %v688 = vld [vmem:[%s2 + $0x160] sm:$0xff]
      %v689 = vld [vmem:[%s2 + $0x168] sm:$0xff]
      %v690 = vld [vmem:[%s2 + $0x170] sm:$0xff]
      %v691 = vld [vmem:[%s2 + $0x178] sm:$0xff]
      %v692 = vld [vmem:[%s2 + $0x180] sm:$0xff]
      %v693 = vld [vmem:[%s2 + $0x188] sm:$0xff]
      %v694 = vld [vmem:[%s2 + $0x190] sm:$0xff]
      %v695 = vld [vmem:[%s2 + $0x198] sm:$0xff]
      %v696 = vld [vmem:[%s2 + $0x1a0] sm:$0xff]
      %v697 = vld [vmem:[%s2 + $0x1a8] sm:$0xff]
      %v698 = vld [vmem:[%s2 + $0x1b0] sm:$0xff]
      %v699 = vld [vmem:[%s2 + $0x1b8] sm:$0xff]
      %v700 = vld [vmem:[%s2 + $0x1c0] sm:$0xff]
      %v701 = vld [vmem:[%s2 + $0x1c8] sm:$0xff]
      %v702 = vld [vmem:[%s2 + $0x1d0] sm:$0xff]
      %v703 = vld [vmem:[%s2 + $0x1d8] sm:$0xff]
      %v704 = vld [vmem:[%s2 + $0x1e0] sm:$0xff]
      %v705 = vld [vmem:[%s2 + $0x1e8] sm:$0xff]
      %v706 = vld [vmem:[%s2 + $0x1f0] sm:$0xff]
      %v707 = vld [vmem:[%s2 + $0x1f8] sm:$0xff]
      %v708 = vld [vmem:[%s3] sm:$0xff]
      %v709 = vld [vmem:[%s4] sm:$0x3]
      %711 = vset.pattern.permute.xlu0 0
      %712 = vperm.xlu0 %711, %v708
      %v713 = vpop.permute.xlu0 %712
      %v716 = vperm.slane %v709, 0
      %v717 = vperm.slane %v709, 1
      %v720 = vmul.f32 %v713, %v716
      %v721 = vmul.f32 %v713, %v717
      %v722 = vand.u32 %v674, 4294901760
      %723 = vmatpush.msra.mxu0 %v722
      %v724 = vand.u32 %v672, 4294901760
      %725 = vmatpush.msra.mxu0 %v724
      %v726 = vand.u32 %v670, 4294901760
      %727 = vmatpush.msra.mxu0 %v726
      %v728 = vand.u32 %v668, 4294901760
      %729 = vmatpush.msra.mxu0 %v728
      %v730 = vand.u32 %v666, 4294901760
      %731 = vmatpush.msra.mxu0 %v730
      %v732 = vand.u32 %v664, 4294901760
      %733 = vmatpush.msra.mxu0 %v732
      %v734 = vand.u32 %v662, 4294901760
      %735 = vmatpush.msra.mxu0 %v734
      %v736 = vand.u32 %v660, 4294901760
      %737 = vmatpush.msra.mxu0 %v736
      %v738 = vand.u32 %v658, 4294901760
      %739 = vmatpush.msra.mxu0 %v738
      %v740 = vand.u32 %v656, 4294901760
      %741 = vmatpush.msra.mxu0 %v740
      %v742 = vand.u32 %v654, 4294901760
      %743 = vmatpush.msra.mxu0 %v742
      %v744 = vand.u32 %v652, 4294901760
      %745 = vmatpush.msra.mxu0 %v744
      %v746 = vand.u32 %v650, 4294901760
      %747 = vmatpush.msra.mxu0 %v746
      %v748 = vand.u32 %v648, 4294901760
      %749 = vmatpush.msra.mxu0 %v748
      %v750 = vand.u32 %v646, 4294901760
      %751 = vmatpush.msra.mxu0 %v750
      %v752 = vand.u32 %v644, 4294901760
      %753 = vmatpush.msra.mxu0 %v752
      %v754 = vand.u32 %v496, 4294901760
      %v755 = vsub.f32 %v496, %v754
      %v756 = vand.u32 %v755, 4294901760
      %v757 = vsub.f32 %v755, %v756
      %v758 = vand.u32 %v757, 4294901760
      %759 = vmatmul.f32.gmra.mxu0 %v758
      %v760 = vpop.f32.mrf.mxu0
      %v761 = vadd.f32 %v720, %v760
      %762 = vdwg.mxu0
      %v763 = vand.u32 %v674, 4294901760
      %v764 = vsub.f32 %v674, %v763
      %v765 = vand.u32 %v764, 4294901760
      %v766 = vsub.f32 %v764, %v765
      %v767 = vand.u32 %v766, 4294901760
      %768 = vmatpush.msra.mxu0 %v767
      %v769 = vand.u32 %v672, 4294901760
      %v770 = vsub.f32 %v672, %v769
      %v771 = vand.u32 %v770, 4294901760
      %v772 = vsub.f32 %v770, %v771
      %v773 = vand.u32 %v772, 4294901760
      %774 = vmatpush.msra.mxu0 %v773
      %v775 = vand.u32 %v670, 4294901760
      %v776 = vsub.f32 %v670, %v775
      %v777 = vand.u32 %v776, 4294901760
      %v778 = vsub.f32 %v776, %v777
      %v779 = vand.u32 %v778, 4294901760
      %780 = vmatpush.msra.mxu0 %v779
      %v781 = vand.u32 %v668, 4294901760
      %v782 = vsub.f32 %v668, %v781
      %v783 = vand.u32 %v782, 4294901760
      %v784 = vsub.f32 %v782, %v783
      %v785 = vand.u32 %v784, 4294901760
      %786 = vmatpush.msra.mxu0 %v785
      %v787 = vand.u32 %v666, 4294901760
      %v788 = vsub.f32 %v666, %v787
      %v789 = vand.u32 %v788, 4294901760
      %v790 = vsub.f32 %v788, %v789
      %v791 = vand.u32 %v790, 4294901760
      %792 = vmatpush.msra.mxu0 %v791
      %v793 = vand.u32 %v664, 4294901760
      %v794 = vsub.f32 %v664, %v793
      %v795 = vand.u32 %v794, 4294901760
      %v796 = vsub.f32 %v794, %v795
      %v797 = vand.u32 %v796, 4294901760
      %798 = vmatpush.msra.mxu0 %v797
      %v799 = vand.u32 %v662, 4294901760
      %v800 = vsub.f32 %v662, %v799
      %v801 = vand.u32 %v800, 4294901760
      %v802 = vsub.f32 %v800, %v801
      %v803 = vand.u32 %v802, 4294901760
      %804 = vmatpush.msra.mxu0 %v803
      %v805 = vand.u32 %v660, 4294901760
      %v806 = vsub.f32 %v660, %v805
      %v807 = vand.u32 %v806, 4294901760
      %v808 = vsub.f32 %v806, %v807
      %v809 = vand.u32 %v808, 4294901760
      %810 = vmatpush.msra.mxu0 %v809
      %v811 = vand.u32 %v658, 4294901760
      %v812 = vsub.f32 %v658, %v811
      %v813 = vand.u32 %v812, 4294901760
      %v814 = vsub.f32 %v812, %v813
      %v815 = vand.u32 %v814, 4294901760
      %816 = vmatpush.msra.mxu0 %v815
      %v817 = vand.u32 %v656, 4294901760
      %v818 = vsub.f32 %v656, %v817
      %v819 = vand.u32 %v818, 4294901760
      %v820 = vsub.f32 %v818, %v819
      %v821 = vand.u32 %v820, 4294901760
      %822 = vmatpush.msra.mxu0 %v821
      %v823 = vand.u32 %v654, 4294901760
      %v824 = vsub.f32 %v654, %v823
      %v825 = vand.u32 %v824, 4294901760
      %v826 = vsub.f32 %v824, %v825
      %v827 = vand.u32 %v826, 4294901760
      %828 = vmatpush.msra.mxu0 %v827
      %v829 = vand.u32 %v652, 4294901760
      %v830 = vsub.f32 %v652, %v829
      %v831 = vand.u32 %v830, 4294901760
      %v832 = vsub.f32 %v830, %v831
      %v833 = vand.u32 %v832, 4294901760
      %834 = vmatpush.msra.mxu0 %v833
      %v835 = vand.u32 %v650, 4294901760
      %v836 = vsub.f32 %v650, %v835
      %v837 = vand.u32 %v836, 4294901760
      %v838 = vsub.f32 %v836, %v837
      %v839 = vand.u32 %v838, 4294901760
      %840 = vmatpush.msra.mxu0 %v839
      %v841 = vand.u32 %v648, 4294901760
      %v842 = vsub.f32 %v648, %v841
      %v843 = vand.u32 %v842, 4294901760
      %v844 = vsub.f32 %v842, %v843
      %v845 = vand.u32 %v844, 4294901760
      %846 = vmatpush.msra.mxu0 %v845
      %v847 = vand.u32 %v646, 4294901760
      %v848 = vsub.f32 %v646, %v847
      %v849 = vand.u32 %v848, 4294901760
      %v850 = vsub.f32 %v848, %v849
      %v851 = vand.u32 %v850, 4294901760
      %852 = vmatpush.msra.mxu0 %v851
      %v853 = vand.u32 %v644, 4294901760
      %v854 = vsub.f32 %v644, %v853
      %v855 = vand.u32 %v854, 4294901760
      %v856 = vsub.f32 %v854, %v855
      %v857 = vand.u32 %v856, 4294901760
      %858 = vmatpush.msra.mxu0 %v857
      %v859 = vand.u32 %v496, 4294901760
      %860 = vmatmul.f32.gmra.mxu0 %v859
      %v861 = vpop.f32.mrf.mxu0
      %v862 = vadd.f32 %v761, %v861
      %863 = vdwg.mxu0
      %v864 = vand.u32 %v674, 4294901760
      %v865 = vsub.f32 %v674, %v864
      %866 = vmatpush.msra.mxu0 %v865
      %v867 = vand.u32 %v672, 4294901760
      %v868 = vsub.f32 %v672, %v867
      %869 = vmatpush.msra.mxu0 %v868
      %v870 = vand.u32 %v670, 4294901760
      %v871 = vsub.f32 %v670, %v870
      %872 = vmatpush.msra.mxu0 %v871
      %v873 = vand.u32 %v668, 4294901760
      %v874 = vsub.f32 %v668, %v873
      %875 = vmatpush.msra.mxu0 %v874
      %v876 = vand.u32 %v666, 4294901760
      %v877 = vsub.f32 %v666, %v876
      %878 = vmatpush.msra.mxu0 %v877
      %v879 = vand.u32 %v664, 4294901760
      %v880 = vsub.f32 %v664, %v879
      %881 = vmatpush.msra.mxu0 %v880
      %v882 = vand.u32 %v662, 4294901760
      %v883 = vsub.f32 %v662, %v882
      %884 = vmatpush.msra.mxu0 %v883
      %v885 = vand.u32 %v660, 4294901760
      %v886 = vsub.f32 %v660, %v885
      %887 = vmatpush.msra.mxu0 %v886
      %v888 = vand.u32 %v658, 4294901760
      %v889 = vsub.f32 %v658, %v888
      %890 = vmatpush.msra.mxu0 %v889
      %v891 = vand.u32 %v656, 4294901760
      %v892 = vsub.f32 %v656, %v891
      %893 = vmatpush.msra.mxu0 %v892
      %v894 = vand.u32 %v654, 4294901760
      %v895 = vsub.f32 %v654, %v894
      %896 = vmatpush.msra.mxu0 %v895
      %v897 = vand.u32 %v652, 4294901760
      %v898 = vsub.f32 %v652, %v897
      %899 = vmatpush.msra.mxu0 %v898
      %v900 = vand.u32 %v650, 4294901760
      %v901 = vsub.f32 %v650, %v900
      %902 = vmatpush.msra.mxu0 %v901
      %v903 = vand.u32 %v648, 4294901760
      %v904 = vsub.f32 %v648, %v903
      %905 = vmatpush.msra.mxu0 %v904
      %v906 = vand.u32 %v646, 4294901760
      %v907 = vsub.f32 %v646, %v906
      %908 = vmatpush.msra.mxu0 %v907
      %v909 = vand.u32 %v644, 4294901760
      %v910 = vsub.f32 %v644, %v909
      %911 = vmatpush.msra.mxu0 %v910
      %v912 = vand.u32 %v496, 4294901760
      %v913 = vsub.f32 %v496, %v912
      %914 = vmatmul.f32.gmra.mxu0 %v913
      %v915 = vpop.f32.mrf.mxu0
      %v916 = vadd.f32 %v862, %v915
      %917 = vdwg.mxu0
      %v918 = vand.u32 %v674, 4294901760
      %919 = vmatpush.msra.mxu0 %v918
      %v920 = vand.u32 %v672, 4294901760
      %921 = vmatpush.msra.mxu0 %v920
      %v922 = vand.u32 %v670, 4294901760
      %923 = vmatpush.msra.mxu0 %v922
      %v924 = vand.u32 %v668, 4294901760
      %925 = vmatpush.msra.mxu0 %v924
      %v926 = vand.u32 %v666, 4294901760
      %927 = vmatpush.msra.mxu0 %v926
      %v928 = vand.u32 %v664, 4294901760
      %929 = vmatpush.msra.mxu0 %v928
      %v930 = vand.u32 %v662, 4294901760
      %931 = vmatpush.msra.mxu0 %v930
      %v932 = vand.u32 %v660, 4294901760
      %933 = vmatpush.msra.mxu0 %v932
      %v934 = vand.u32 %v658, 4294901760
      %935 = vmatpush.msra.mxu0 %v934
      %v936 = vand.u32 %v656, 4294901760
      %937 = vmatpush.msra.mxu0 %v936
      %v938 = vand.u32 %v654, 4294901760
      %939 = vmatpush.msra.mxu0 %v938
      %v940 = vand.u32 %v652, 4294901760
      %941 = vmatpush.msra.mxu0 %v940
      %v942 = vand.u32 %v650, 4294901760
      %943 = vmatpush.msra.mxu0 %v942
      %v944 = vand.u32 %v648, 4294901760
      %945 = vmatpush.msra.mxu0 %v944
      %v946 = vand.u32 %v646, 4294901760
      %947 = vmatpush.msra.mxu0 %v946
      %v948 = vand.u32 %v644, 4294901760
      %949 = vmatpush.msra.mxu0 %v948
      %v950 = vand.u32 %v496, 4294901760
      %v951 = vsub.f32 %v496, %v950
      %v952 = vand.u32 %v951, 4294901760
      %953 = vmatmul.f32.gmra.mxu0 %v952
      %v954 = vpop.f32.mrf.mxu0
      %v955 = vadd.f32 %v916, %v954
      %956 = vdwg.mxu0
      %v957 = vand.u32 %v674, 4294901760
      %v958 = vsub.f32 %v674, %v957
      %v959 = vand.u32 %v958, 4294901760
      %960 = vmatpush.msra.mxu0 %v959
      %v961 = vand.u32 %v672, 4294901760
      %v962 = vsub.f32 %v672, %v961
      %v963 = vand.u32 %v962, 4294901760
      %964 = vmatpush.msra.mxu0 %v963
      %v965 = vand.u32 %v670, 4294901760
      %v966 = vsub.f32 %v670, %v965
      %v967 = vand.u32 %v966, 4294901760
      %968 = vmatpush.msra.mxu0 %v967
      %v969 = vand.u32 %v668, 4294901760
      %v970 = vsub.f32 %v668, %v969
      %v971 = vand.u32 %v970, 4294901760
      %972 = vmatpush.msra.mxu0 %v971
      %v973 = vand.u32 %v666, 4294901760
      %v974 = vsub.f32 %v666, %v973
      %v975 = vand.u32 %v974, 4294901760
      %976 = vmatpush.msra.mxu0 %v975
      %v977 = vand.u32 %v664, 4294901760
      %v978 = vsub.f32 %v664, %v977
      %v979 = vand.u32 %v978, 4294901760
      %980 = vmatpush.msra.mxu0 %v979
      %v981 = vand.u32 %v662, 4294901760
      %v982 = vsub.f32 %v662, %v981
      %v983 = vand.u32 %v982, 4294901760
      %984 = vmatpush.msra.mxu0 %v983
      %v985 = vand.u32 %v660, 4294901760
      %v986 = vsub.f32 %v660, %v985
      %v987 = vand.u32 %v986, 4294901760
      %988 = vmatpush.msra.mxu0 %v987
      %v989 = vand.u32 %v658, 4294901760
      %v990 = vsub.f32 %v658, %v989
      %v991 = vand.u32 %v990, 4294901760
      %992 = vmatpush.msra.mxu0 %v991
      %v993 = vand.u32 %v656, 4294901760
      %v994 = vsub.f32 %v656, %v993
      %v995 = vand.u32 %v994, 4294901760
      %996 = vmatpush.msra.mxu0 %v995
      %v997 = vand.u32 %v654, 4294901760
      %v998 = vsub.f32 %v654, %v997
      %v999 = vand.u32 %v998, 4294901760
      %1000 = vmatpush.msra.mxu0 %v999
      %v1001 = vand.u32 %v652, 4294901760
      %v1002 = vsub.f32 %v652, %v1001
      %v1003 = vand.u32 %v1002, 4294901760
      %1004 = vmatpush.msra.mxu0 %v1003
      %v1005 = vand.u32 %v650, 4294901760
      %v1006 = vsub.f32 %v650, %v1005
      %v1007 = vand.u32 %v1006, 4294901760
      %1008 = vmatpush.msra.mxu0 %v1007
      %v1009 = vand.u32 %v648, 4294901760
      %v1010 = vsub.f32 %v648, %v1009
      %v1011 = vand.u32 %v1010, 4294901760
      %1012 = vmatpush.msra.mxu0 %v1011
      %v1013 = vand.u32 %v646, 4294901760
      %v1014 = vsub.f32 %v646, %v1013
      %v1015 = vand.u32 %v1014, 4294901760
      %1016 = vmatpush.msra.mxu0 %v1015
      %v1017 = vand.u32 %v644, 4294901760
      %v1018 = vsub.f32 %v644, %v1017
      %v1019 = vand.u32 %v1018, 4294901760
      %1020 = vmatpush.msra.mxu0 %v1019
      %v1021 = vand.u32 %v496, 4294901760
      %1022 = vmatmul.f32.gmra.mxu0 %v1021
      %v1023 = vpop.f32.mrf.mxu0
      %v1024 = vadd.f32 %v955, %v1023
      %1025 = vdwg.mxu0
      %v1026 = vand.u32 %v674, 4294901760
      %1027 = vmatpush.msra.mxu0 %v1026
      %v1028 = vand.u32 %v672, 4294901760
      %1029 = vmatpush.msra.mxu0 %v1028
      %v1030 = vand.u32 %v670, 4294901760
      %1031 = vmatpush.msra.mxu0 %v1030
      %v1032 = vand.u32 %v668, 4294901760
      %1033 = vmatpush.msra.mxu0 %v1032
      %v1034 = vand.u32 %v666, 4294901760
      %1035 = vmatpush.msra.mxu0 %v1034
      %v1036 = vand.u32 %v664, 4294901760
      %1037 = vmatpush.msra.mxu0 %v1036
      %v1038 = vand.u32 %v662, 4294901760
      %1039 = vmatpush.msra.mxu0 %v1038
      %v1040 = vand.u32 %v660, 4294901760
      %1041 = vmatpush.msra.mxu0 %v1040
      %v1042 = vand.u32 %v658, 4294901760
      %1043 = vmatpush.msra.mxu0 %v1042
      %v1044 = vand.u32 %v656, 4294901760
      %1045 = vmatpush.msra.mxu0 %v1044
      %v1046 = vand.u32 %v654, 4294901760
      %1047 = vmatpush.msra.mxu0 %v1046
      %v1048 = vand.u32 %v652, 4294901760
      %1049 = vmatpush.msra.mxu0 %v1048
      %v1050 = vand.u32 %v650, 4294901760
      %1051 = vmatpush.msra.mxu0 %v1050
      %v1052 = vand.u32 %v648, 4294901760
      %1053 = vmatpush.msra.mxu0 %v1052
      %v1054 = vand.u32 %v646, 4294901760
      %1055 = vmatpush.msra.mxu0 %v1054
      %v1056 = vand.u32 %v644, 4294901760
      %1057 = vmatpush.msra.mxu0 %v1056
      %v1058 = vand.u32 %v496, 4294901760
      %1059 = vmatmul.f32.gmra.mxu0 %v1058
      %v1060 = vpop.f32.mrf.mxu0
      %v1061 = vadd.f32 %v1024, %v1060
      %1062 = vdwg.mxu0
      %v1063 = vand.u32 %v706, 4294901760
      %1064 = vmatpush.msra.mxu0 %v1063
      %v1065 = vand.u32 %v704, 4294901760
      %1066 = vmatpush.msra.mxu0 %v1065
      %v1067 = vand.u32 %v702, 4294901760
      %1068 = vmatpush.msra.mxu0 %v1067
      %v1069 = vand.u32 %v700, 4294901760
      %1070 = vmatpush.msra.mxu0 %v1069
      %v1071 = vand.u32 %v698, 4294901760
      %1072 = vmatpush.msra.mxu0 %v1071
      %v1073 = vand.u32 %v696, 4294901760
      %1074 = vmatpush.msra.mxu0 %v1073
      %v1075 = vand.u32 %v694, 4294901760
      %1076 = vmatpush.msra.mxu0 %v1075
      %v1077 = vand.u32 %v692, 4294901760
      %1078 = vmatpush.msra.mxu0 %v1077
      %v1079 = vand.u32 %v690, 4294901760
      %1080 = vmatpush.msra.mxu0 %v1079
      %v1081 = vand.u32 %v688, 4294901760
      %1082 = vmatpush.msra.mxu0 %v1081
      %v1083 = vand.u32 %v686, 4294901760
      %1084 = vmatpush.msra.mxu0 %v1083
      %v1085 = vand.u32 %v684, 4294901760
      %1086 = vmatpush.msra.mxu0 %v1085
      %v1087 = vand.u32 %v682, 4294901760
      %1088 = vmatpush.msra.mxu0 %v1087
      %v1089 = vand.u32 %v680, 4294901760
      %1090 = vmatpush.msra.mxu0 %v1089
      %v1091 = vand.u32 %v678, 4294901760
      %1092 = vmatpush.msra.mxu0 %v1091
      %v1093 = vand.u32 %v676, 4294901760
      %1094 = vmatpush.msra.mxu0 %v1093
      %v1095 = vand.u32 %v642, 4294901760
      %v1096 = vsub.f32 %v642, %v1095
      %v1097 = vand.u32 %v1096, 4294901760
      %v1098 = vsub.f32 %v1096, %v1097
      %v1099 = vand.u32 %v1098, 4294901760
      %1100 = vmatmul.f32.gmra.mxu0 %v1099
      %v1101 = vpop.f32.mrf.mxu0
      %v1102 = vadd.f32 %v1061, %v1101
      %1103 = vdwg.mxu0
      %v1104 = vand.u32 %v706, 4294901760
      %v1105 = vsub.f32 %v706, %v1104
      %v1106 = vand.u32 %v1105, 4294901760
      %v1107 = vsub.f32 %v1105, %v1106
      %v1108 = vand.u32 %v1107, 4294901760
      %1109 = vmatpush.msra.mxu0 %v1108
      %v1110 = vand.u32 %v704, 4294901760
      %v1111 = vsub.f32 %v704, %v1110
      %v1112 = vand.u32 %v1111, 4294901760
      %v1113 = vsub.f32 %v1111, %v1112
      %v1114 = vand.u32 %v1113, 4294901760
      %1115 = vmatpush.msra.mxu0 %v1114
      %v1116 = vand.u32 %v702, 4294901760
      %v1117 = vsub.f32 %v702, %v1116
      %v1118 = vand.u32 %v1117, 4294901760
      %v1119 = vsub.f32 %v1117, %v1118
      %v1120 = vand.u32 %v1119, 4294901760
      %1121 = vmatpush.msra.mxu0 %v1120
      %v1122 = vand.u32 %v700, 4294901760
      %v1123 = vsub.f32 %v700, %v1122
      %v1124 = vand.u32 %v1123, 4294901760
      %v1125 = vsub.f32 %v1123, %v1124
      %v1126 = vand.u32 %v1125, 4294901760
      %1127 = vmatpush.msra.mxu0 %v1126
      %v1128 = vand.u32 %v698, 4294901760
      %v1129 = vsub.f32 %v698, %v1128
      %v1130 = vand.u32 %v1129, 4294901760
      %v1131 = vsub.f32 %v1129, %v1130
      %v1132 = vand.u32 %v1131, 4294901760
      %1133 = vmatpush.msra.mxu0 %v1132
      %v1134 = vand.u32 %v696, 4294901760
      %v1135 = vsub.f32 %v696, %v1134
      %v1136 = vand.u32 %v1135, 4294901760
      %v1137 = vsub.f32 %v1135, %v1136
      %v1138 = vand.u32 %v1137, 4294901760
      %1139 = vmatpush.msra.mxu0 %v1138
      %v1140 = vand.u32 %v694, 4294901760
      %v1141 = vsub.f32 %v694, %v1140
      %v1142 = vand.u32 %v1141, 4294901760
      %v1143 = vsub.f32 %v1141, %v1142
      %v1144 = vand.u32 %v1143, 4294901760
      %1145 = vmatpush.msra.mxu0 %v1144
      %v1146 = vand.u32 %v692, 4294901760
      %v1147 = vsub.f32 %v692, %v1146
      %v1148 = vand.u32 %v1147, 4294901760
      %v1149 = vsub.f32 %v1147, %v1148
      %v1150 = vand.u32 %v1149, 4294901760
      %1151 = vmatpush.msra.mxu0 %v1150
      %v1152 = vand.u32 %v690, 4294901760
      %v1153 = vsub.f32 %v690, %v1152
      %v1154 = vand.u32 %v1153, 4294901760
      %v1155 = vsub.f32 %v1153, %v1154
      %v1156 = vand.u32 %v1155, 4294901760
      %1157 = vmatpush.msra.mxu0 %v1156
      %v1158 = vand.u32 %v688, 4294901760
      %v1159 = vsub.f32 %v688, %v1158
      %v1160 = vand.u32 %v1159, 4294901760
      %v1161 = vsub.f32 %v1159, %v1160
      %v1162 = vand.u32 %v1161, 4294901760
      %1163 = vmatpush.msra.mxu0 %v1162
      %v1164 = vand.u32 %v686, 4294901760
      %v1165 = vsub.f32 %v686, %v1164
      %v1166 = vand.u32 %v1165, 4294901760
      %v1167 = vsub.f32 %v1165, %v1166
      %v1168 = vand.u32 %v1167, 4294901760
      %1169 = vmatpush.msra.mxu0 %v1168
      %v1170 = vand.u32 %v684, 4294901760
      %v1171 = vsub.f32 %v684, %v1170
      %v1172 = vand.u32 %v1171, 4294901760
      %v1173 = vsub.f32 %v1171, %v1172
      %v1174 = vand.u32 %v1173, 4294901760
      %1175 = vmatpush.msra.mxu0 %v1174
      %v1176 = vand.u32 %v682, 4294901760
      %v1177 = vsub.f32 %v682, %v1176
      %v1178 = vand.u32 %v1177, 4294901760
      %v1179 = vsub.f32 %v1177, %v1178
      %v1180 = vand.u32 %v1179, 4294901760
      %1181 = vmatpush.msra.mxu0 %v1180
      %v1182 = vand.u32 %v680, 4294901760
      %v1183 = vsub.f32 %v680, %v1182
      %v1184 = vand.u32 %v1183, 4294901760
      %v1185 = vsub.f32 %v1183, %v1184
      %v1186 = vand.u32 %v1185, 4294901760
      %1187 = vmatpush.msra.mxu0 %v1186
      %v1188 = vand.u32 %v678, 4294901760
      %v1189 = vsub.f32 %v678, %v1188
      %v1190 = vand.u32 %v1189, 4294901760
      %v1191 = vsub.f32 %v1189, %v1190
      %v1192 = vand.u32 %v1191, 4294901760
      %1193 = vmatpush.msra.mxu0 %v1192
      %v1194 = vand.u32 %v676, 4294901760
      %v1195 = vsub.f32 %v676, %v1194
      %v1196 = vand.u32 %v1195, 4294901760
      %v1197 = vsub.f32 %v1195, %v1196
      %v1198 = vand.u32 %v1197, 4294901760
      %1199 = vmatpush.msra.mxu0 %v1198
      %v1200 = vand.u32 %v642, 4294901760
      %1201 = vmatmul.f32.gmra.mxu0 %v1200
      %v1202 = vpop.f32.mrf.mxu0
      %v1203 = vadd.f32 %v1102, %v1202
      %1204 = vdwg.mxu0
      %v1205 = vand.u32 %v706, 4294901760
      %v1206 = vsub.f32 %v706, %v1205
      %1207 = vmatpush.msra.mxu0 %v1206
      %v1208 = vand.u32 %v704, 4294901760
      %v1209 = vsub.f32 %v704, %v1208
      %1210 = vmatpush.msra.mxu0 %v1209
      %v1211 = vand.u32 %v702, 4294901760
      %v1212 = vsub.f32 %v702, %v1211
      %1213 = vmatpush.msra.mxu0 %v1212
      %v1214 = vand.u32 %v700, 4294901760
      %v1215 = vsub.f32 %v700, %v1214
      %1216 = vmatpush.msra.mxu0 %v1215
      %v1217 = vand.u32 %v698, 4294901760
      %v1218 = vsub.f32 %v698, %v1217
      %1219 = vmatpush.msra.mxu0 %v1218
      %v1220 = vand.u32 %v696, 4294901760
      %v1221 = vsub.f32 %v696, %v1220
      %1222 = vmatpush.msra.mxu0 %v1221
      %v1223 = vand.u32 %v694, 4294901760
      %v1224 = vsub.f32 %v694, %v1223
      %1225 = vmatpush.msra.mxu0 %v1224
      %v1226 = vand.u32 %v692, 4294901760
      %v1227 = vsub.f32 %v692, %v1226
      %1228 = vmatpush.msra.mxu0 %v1227
      %v1229 = vand.u32 %v690, 4294901760
      %v1230 = vsub.f32 %v690, %v1229
      %1231 = vmatpush.msra.mxu0 %v1230
      %v1232 = vand.u32 %v688, 4294901760
      %v1233 = vsub.f32 %v688, %v1232
      %1234 = vmatpush.msra.mxu0 %v1233
      %v1235 = vand.u32 %v686, 4294901760
      %v1236 = vsub.f32 %v686, %v1235
      %1237 = vmatpush.msra.mxu0 %v1236
      %v1238 = vand.u32 %v684, 4294901760
      %v1239 = vsub.f32 %v684, %v1238
      %1240 = vmatpush.msra.mxu0 %v1239
      %v1241 = vand.u32 %v682, 4294901760
      %v1242 = vsub.f32 %v682, %v1241
      %1243 = vmatpush.msra.mxu0 %v1242
      %v1244 = vand.u32 %v680, 4294901760
      %v1245 = vsub.f32 %v680, %v1244
      %1246 = vmatpush.msra.mxu0 %v1245
      %v1247 = vand.u32 %v678, 4294901760
      %v1248 = vsub.f32 %v678, %v1247
      %1249 = vmatpush.msra.mxu0 %v1248
      %v1250 = vand.u32 %v676, 4294901760
      %v1251 = vsub.f32 %v676, %v1250
      %1252 = vmatpush.msra.mxu0 %v1251
      %v1253 = vand.u32 %v642, 4294901760
      %v1254 = vsub.f32 %v642, %v1253
      %1255 = vmatmul.f32.gmra.mxu0 %v1254
      %v1256 = vpop.f32.mrf.mxu0
      %v1257 = vadd.f32 %v1203, %v1256
      %1258 = vdwg.mxu0
      %v1259 = vand.u32 %v706, 4294901760
      %1260 = vmatpush.msra.mxu0 %v1259
      %v1261 = vand.u32 %v704, 4294901760
      %1262 = vmatpush.msra.mxu0 %v1261
      %v1263 = vand.u32 %v702, 4294901760
      %1264 = vmatpush.msra.mxu0 %v1263
      %v1265 = vand.u32 %v700, 4294901760
      %1266 = vmatpush.msra.mxu0 %v1265
      %v1267 = vand.u32 %v698, 4294901760
      %1268 = vmatpush.msra.mxu0 %v1267
      %v1269 = vand.u32 %v696, 4294901760
      %1270 = vmatpush.msra.mxu0 %v1269
      %v1271 = vand.u32 %v694, 4294901760
      %1272 = vmatpush.msra.mxu0 %v1271
      %v1273 = vand.u32 %v692, 4294901760
      %1274 = vmatpush.msra.mxu0 %v1273
      %v1275 = vand.u32 %v690, 4294901760
      %1276 = vmatpush.msra.mxu0 %v1275
      %v1277 = vand.u32 %v688, 4294901760
      %1278 = vmatpush.msra.mxu0 %v1277
      %v1279 = vand.u32 %v686, 4294901760
      %1280 = vmatpush.msra.mxu0 %v1279
      %v1281 = vand.u32 %v684, 4294901760
      %1282 = vmatpush.msra.mxu0 %v1281
      %v1283 = vand.u32 %v682, 4294901760
      %1284 = vmatpush.msra.mxu0 %v1283
      %v1285 = vand.u32 %v680, 4294901760
      %1286 = vmatpush.msra.mxu0 %v1285
      %v1287 = vand.u32 %v678, 4294901760
      %1288 = vmatpush.msra.mxu0 %v1287
      %v1289 = vand.u32 %v676, 4294901760
      %1290 = vmatpush.msra.mxu0 %v1289
      %v1291 = vand.u32 %v642, 4294901760
      %v1292 = vsub.f32 %v642, %v1291
      %v1293 = vand.u32 %v1292, 4294901760
      %1294 = vmatmul.f32.gmra.mxu0 %v1293
      %v1295 = vpop.f32.mrf.mxu0
      %v1296 = vadd.f32 %v1257, %v1295
      %1297 = vdwg.mxu0
      %v1298 = vand.u32 %v706, 4294901760
      %v1299 = vsub.f32 %v706, %v1298
      %v1300 = vand.u32 %v1299, 4294901760
      %1301 = vmatpush.msra.mxu0 %v1300
      %v1302 = vand.u32 %v704, 4294901760
      %v1303 = vsub.f32 %v704, %v1302
      %v1304 = vand.u32 %v1303, 4294901760
      %1305 = vmatpush.msra.mxu0 %v1304
      %v1306 = vand.u32 %v702, 4294901760
      %v1307 = vsub.f32 %v702, %v1306
      %v1308 = vand.u32 %v1307, 4294901760
      %1309 = vmatpush.msra.mxu0 %v1308
      %v1310 = vand.u32 %v700, 4294901760
      %v1311 = vsub.f32 %v700, %v1310
      %v1312 = vand.u32 %v1311, 4294901760
      %1313 = vmatpush.msra.mxu0 %v1312
      %v1314 = vand.u32 %v698, 4294901760
      %v1315 = vsub.f32 %v698, %v1314
      %v1316 = vand.u32 %v1315, 4294901760
      %1317 = vmatpush.msra.mxu0 %v1316
      %v1318 = vand.u32 %v696, 4294901760
      %v1319 = vsub.f32 %v696, %v1318
      %v1320 = vand.u32 %v1319, 4294901760
      %1321 = vmatpush.msra.mxu0 %v1320
      %v1322 = vand.u32 %v694, 4294901760
      %v1323 = vsub.f32 %v694, %v1322
      %v1324 = vand.u32 %v1323, 4294901760
      %1325 = vmatpush.msra.mxu0 %v1324
      %v1326 = vand.u32 %v692, 4294901760
      %v1327 = vsub.f32 %v692, %v1326
      %v1328 = vand.u32 %v1327, 4294901760
      %1329 = vmatpush.msra.mxu0 %v1328
      %v1330 = vand.u32 %v690, 4294901760
      %v1331 = vsub.f32 %v690, %v1330
      %v1332 = vand.u32 %v1331, 4294901760
      %1333 = vmatpush.msra.mxu0 %v1332
      %v1334 = vand.u32 %v688, 4294901760
      %v1335 = vsub.f32 %v688, %v1334
      %v1336 = vand.u32 %v1335, 4294901760
      %1337 = vmatpush.msra.mxu0 %v1336
      %v1338 = vand.u32 %v686, 4294901760
      %v1339 = vsub.f32 %v686, %v1338
      %v1340 = vand.u32 %v1339, 4294901760
      %1341 = vmatpush.msra.mxu0 %v1340
      %v1342 = vand.u32 %v684, 4294901760
      %v1343 = vsub.f32 %v684, %v1342
      %v1344 = vand.u32 %v1343, 4294901760
      %1345 = vmatpush.msra.mxu0 %v1344
      %v1346 = vand.u32 %v682, 4294901760
      %v1347 = vsub.f32 %v682, %v1346
      %v1348 = vand.u32 %v1347, 4294901760
      %1349 = vmatpush.msra.mxu0 %v1348
      %v1350 = vand.u32 %v680, 4294901760
      %v1351 = vsub.f32 %v680, %v1350
      %v1352 = vand.u32 %v1351, 4294901760
      %1353 = vmatpush.msra.mxu0 %v1352
      %v1354 = vand.u32 %v678, 4294901760
      %v1355 = vsub.f32 %v678, %v1354
      %v1356 = vand.u32 %v1355, 4294901760
      %1357 = vmatpush.msra.mxu0 %v1356
      %v1358 = vand.u32 %v676, 4294901760
      %v1359 = vsub.f32 %v676, %v1358
      %v1360 = vand.u32 %v1359, 4294901760
      %1361 = vmatpush.msra.mxu0 %v1360
      %v1362 = vand.u32 %v642, 4294901760
      %1363 = vmatmul.f32.gmra.mxu0 %v1362
      %v1364 = vpop.f32.mrf.mxu0
      %v1365 = vadd.f32 %v1296, %v1364
      %1366 = vdwg.mxu0
      %v1367 = vand.u32 %v706, 4294901760
      %1368 = vmatpush.msra.mxu0 %v1367
      %v1369 = vand.u32 %v704, 4294901760
      %1370 = vmatpush.msra.mxu0 %v1369
      %v1371 = vand.u32 %v702, 4294901760
      %1372 = vmatpush.msra.mxu0 %v1371
      %v1373 = vand.u32 %v700, 4294901760
      %1374 = vmatpush.msra.mxu0 %v1373
      %v1375 = vand.u32 %v698, 4294901760
      %1376 = vmatpush.msra.mxu0 %v1375
      %v1377 = vand.u32 %v696, 4294901760
      %1378 = vmatpush.msra.mxu0 %v1377
      %v1379 = vand.u32 %v694, 4294901760
      %1380 = vmatpush.msra.mxu0 %v1379
      %v1381 = vand.u32 %v692, 4294901760
      %1382 = vmatpush.msra.mxu0 %v1381
      %v1383 = vand.u32 %v690, 4294901760
      %1384 = vmatpush.msra.mxu0 %v1383
      %v1385 = vand.u32 %v688, 4294901760
      %1386 = vmatpush.msra.mxu0 %v1385
      %v1387 = vand.u32 %v686, 4294901760
      %1388 = vmatpush.msra.mxu0 %v1387
      %v1389 = vand.u32 %v684, 4294901760
      %1390 = vmatpush.msra.mxu0 %v1389
      %v1391 = vand.u32 %v682, 4294901760
      %1392 = vmatpush.msra.mxu0 %v1391
      %v1393 = vand.u32 %v680, 4294901760
      %1394 = vmatpush.msra.mxu0 %v1393
      %v1395 = vand.u32 %v678, 4294901760
      %1396 = vmatpush.msra.mxu0 %v1395
      %v1397 = vand.u32 %v676, 4294901760
      %1398 = vmatpush.msra.mxu0 %v1397
      %v1399 = vand.u32 %v642, 4294901760
      %1400 = vmatmul.f32.gmra.mxu0 %v1399
      %v1401 = vpop.f32.mrf.mxu0
      %v1402 = vadd.f32 %v1365, %v1401
      %1403 = vdwg.mxu0
      %v1404 = vand.u32 %v675, 4294901760
      %1405 = vmatpush.msra.mxu0 %v1404
      %v1406 = vand.u32 %v673, 4294901760
      %1407 = vmatpush.msra.mxu0 %v1406
      %v1408 = vand.u32 %v671, 4294901760
      %1409 = vmatpush.msra.mxu0 %v1408
      %v1410 = vand.u32 %v669, 4294901760
      %1411 = vmatpush.msra.mxu0 %v1410
      %v1412 = vand.u32 %v667, 4294901760
      %1413 = vmatpush.msra.mxu0 %v1412
      %v1414 = vand.u32 %v665, 4294901760
      %1415 = vmatpush.msra.mxu0 %v1414
      %v1416 = vand.u32 %v663, 4294901760
      %1417 = vmatpush.msra.mxu0 %v1416
      %v1418 = vand.u32 %v661, 4294901760
      %1419 = vmatpush.msra.mxu0 %v1418
      %v1420 = vand.u32 %v659, 4294901760
      %1421 = vmatpush.msra.mxu0 %v1420
      %v1422 = vand.u32 %v657, 4294901760
      %1423 = vmatpush.msra.mxu0 %v1422
      %v1424 = vand.u32 %v655, 4294901760
      %1425 = vmatpush.msra.mxu0 %v1424
      %v1426 = vand.u32 %v653, 4294901760
      %1427 = vmatpush.msra.mxu0 %v1426
      %v1428 = vand.u32 %v651, 4294901760
      %1429 = vmatpush.msra.mxu0 %v1428
      %v1430 = vand.u32 %v649, 4294901760
      %1431 = vmatpush.msra.mxu0 %v1430
      %v1432 = vand.u32 %v647, 4294901760
      %1433 = vmatpush.msra.mxu0 %v1432
      %v1434 = vand.u32 %v645, 4294901760
      %1435 = vmatpush.msra.mxu0 %v1434
      %v1436 = vand.u32 %v496, 4294901760
      %v1437 = vsub.f32 %v496, %v1436
      %v1438 = vand.u32 %v1437, 4294901760
      %v1439 = vsub.f32 %v1437, %v1438
      %v1440 = vand.u32 %v1439, 4294901760
      %1441 = vmatmul.f32.gmra.mxu0 %v1440
      %v1442 = vpop.f32.mrf.mxu0
      %v1443 = vadd.f32 %v721, %v1442
      %1444 = vdwg.mxu0
      %v1445 = vand.u32 %v675, 4294901760
      %v1446 = vsub.f32 %v675, %v1445
      %v1447 = vand.u32 %v1446, 4294901760
      %v1448 = vsub.f32 %v1446, %v1447
      %v1449 = vand.u32 %v1448, 4294901760
      %1450 = vmatpush.msra.mxu0 %v1449
      %v1451 = vand.u32 %v673, 4294901760
      %v1452 = vsub.f32 %v673, %v1451
      %v1453 = vand.u32 %v1452, 4294901760
      %v1454 = vsub.f32 %v1452, %v1453
      %v1455 = vand.u32 %v1454, 4294901760
      %1456 = vmatpush.msra.mxu0 %v1455
      %v1457 = vand.u32 %v671, 4294901760
      %v1458 = vsub.f32 %v671, %v1457
      %v1459 = vand.u32 %v1458, 4294901760
      %v1460 = vsub.f32 %v1458, %v1459
      %v1461 = vand.u32 %v1460, 4294901760
      %1462 = vmatpush.msra.mxu0 %v1461
      %v1463 = vand.u32 %v669, 4294901760
      %v1464 = vsub.f32 %v669, %v1463
      %v1465 = vand.u32 %v1464, 4294901760
      %v1466 = vsub.f32 %v1464, %v1465
      %v1467 = vand.u32 %v1466, 4294901760
      %1468 = vmatpush.msra.mxu0 %v1467
      %v1469 = vand.u32 %v667, 4294901760
      %v1470 = vsub.f32 %v667, %v1469
      %v1471 = vand.u32 %v1470, 4294901760
      %v1472 = vsub.f32 %v1470, %v1471
      %v1473 = vand.u32 %v1472, 4294901760
      %1474 = vmatpush.msra.mxu0 %v1473
      %v1475 = vand.u32 %v665, 4294901760
      %v1476 = vsub.f32 %v665, %v1475
      %v1477 = vand.u32 %v1476, 4294901760
      %v1478 = vsub.f32 %v1476, %v1477
      %v1479 = vand.u32 %v1478, 4294901760
      %1480 = vmatpush.msra.mxu0 %v1479
      %v1481 = vand.u32 %v663, 4294901760
      %v1482 = vsub.f32 %v663, %v1481
      %v1483 = vand.u32 %v1482, 4294901760
      %v1484 = vsub.f32 %v1482, %v1483
      %v1485 = vand.u32 %v1484, 4294901760
      %1486 = vmatpush.msra.mxu0 %v1485
      %v1487 = vand.u32 %v661, 4294901760
      %v1488 = vsub.f32 %v661, %v1487
      %v1489 = vand.u32 %v1488, 4294901760
      %v1490 = vsub.f32 %v1488, %v1489
      %v1491 = vand.u32 %v1490, 4294901760
      %1492 = vmatpush.msra.mxu0 %v1491
      %v1493 = vand.u32 %v659, 4294901760
      %v1494 = vsub.f32 %v659, %v1493
      %v1495 = vand.u32 %v1494, 4294901760
      %v1496 = vsub.f32 %v1494, %v1495
      %v1497 = vand.u32 %v1496, 4294901760
      %1498 = vmatpush.msra.mxu0 %v1497
      %v1499 = vand.u32 %v657, 4294901760
      %v1500 = vsub.f32 %v657, %v1499
      %v1501 = vand.u32 %v1500, 4294901760
      %v1502 = vsub.f32 %v1500, %v1501
      %v1503 = vand.u32 %v1502, 4294901760
      %1504 = vmatpush.msra.mxu0 %v1503
      %v1505 = vand.u32 %v655, 4294901760
      %v1506 = vsub.f32 %v655, %v1505
      %v1507 = vand.u32 %v1506, 4294901760
      %v1508 = vsub.f32 %v1506, %v1507
      %v1509 = vand.u32 %v1508, 4294901760
      %1510 = vmatpush.msra.mxu0 %v1509
      %v1511 = vand.u32 %v653, 4294901760
      %v1512 = vsub.f32 %v653, %v1511
      %v1513 = vand.u32 %v1512, 4294901760
      %v1514 = vsub.f32 %v1512, %v1513
      %v1515 = vand.u32 %v1514, 4294901760
      %1516 = vmatpush.msra.mxu0 %v1515
      %v1517 = vand.u32 %v651, 4294901760
      %v1518 = vsub.f32 %v651, %v1517
      %v1519 = vand.u32 %v1518, 4294901760
      %v1520 = vsub.f32 %v1518, %v1519
      %v1521 = vand.u32 %v1520, 4294901760
      %1522 = vmatpush.msra.mxu0 %v1521
      %v1523 = vand.u32 %v649, 4294901760
      %v1524 = vsub.f32 %v649, %v1523
      %v1525 = vand.u32 %v1524, 4294901760
      %v1526 = vsub.f32 %v1524, %v1525
      %v1527 = vand.u32 %v1526, 4294901760
      %1528 = vmatpush.msra.mxu0 %v1527
      %v1529 = vand.u32 %v647, 4294901760
      %v1530 = vsub.f32 %v647, %v1529
      %v1531 = vand.u32 %v1530, 4294901760
      %v1532 = vsub.f32 %v1530, %v1531
      %v1533 = vand.u32 %v1532, 4294901760
      %1534 = vmatpush.msra.mxu0 %v1533
      %v1535 = vand.u32 %v645, 4294901760
      %v1536 = vsub.f32 %v645, %v1535
      %v1537 = vand.u32 %v1536, 4294901760
      %v1538 = vsub.f32 %v1536, %v1537
      %v1539 = vand.u32 %v1538, 4294901760
      %1540 = vmatpush.msra.mxu0 %v1539
      %v1541 = vand.u32 %v496, 4294901760
      %1542 = vmatmul.f32.gmra.mxu0 %v1541
      %v1543 = vpop.f32.mrf.mxu0
      %v1544 = vadd.f32 %v1443, %v1543
      %1545 = vdwg.mxu0
      %v1546 = vand.u32 %v675, 4294901760
      %v1547 = vsub.f32 %v675, %v1546
      %1548 = vmatpush.msra.mxu0 %v1547
      %v1549 = vand.u32 %v673, 4294901760
      %v1550 = vsub.f32 %v673, %v1549
      %1551 = vmatpush.msra.mxu0 %v1550
      %v1552 = vand.u32 %v671, 4294901760
      %v1553 = vsub.f32 %v671, %v1552
      %1554 = vmatpush.msra.mxu0 %v1553
      %v1555 = vand.u32 %v669, 4294901760
      %v1556 = vsub.f32 %v669, %v1555
      %1557 = vmatpush.msra.mxu0 %v1556
      %v1558 = vand.u32 %v667, 4294901760
      %v1559 = vsub.f32 %v667, %v1558
      %1560 = vmatpush.msra.mxu0 %v1559
      %v1561 = vand.u32 %v665, 4294901760
      %v1562 = vsub.f32 %v665, %v1561
      %1563 = vmatpush.msra.mxu0 %v1562
      %v1564 = vand.u32 %v663, 4294901760
      %v1565 = vsub.f32 %v663, %v1564
      %1566 = vmatpush.msra.mxu0 %v1565
      %v1567 = vand.u32 %v661, 4294901760
      %v1568 = vsub.f32 %v661, %v1567
      %1569 = vmatpush.msra.mxu0 %v1568
      %v1570 = vand.u32 %v659, 4294901760
      %v1571 = vsub.f32 %v659, %v1570
      %1572 = vmatpush.msra.mxu0 %v1571
      %v1573 = vand.u32 %v657, 4294901760
      %v1574 = vsub.f32 %v657, %v1573
      %1575 = vmatpush.msra.mxu0 %v1574
      %v1576 = vand.u32 %v655, 4294901760
      %v1577 = vsub.f32 %v655, %v1576
      %1578 = vmatpush.msra.mxu0 %v1577
      %v1579 = vand.u32 %v653, 4294901760
      %v1580 = vsub.f32 %v653, %v1579
      %1581 = vmatpush.msra.mxu0 %v1580
      %v1582 = vand.u32 %v651, 4294901760
      %v1583 = vsub.f32 %v651, %v1582
      %1584 = vmatpush.msra.mxu0 %v1583
      %v1585 = vand.u32 %v649, 4294901760
      %v1586 = vsub.f32 %v649, %v1585
      %1587 = vmatpush.msra.mxu0 %v1586
      %v1588 = vand.u32 %v647, 4294901760
      %v1589 = vsub.f32 %v647, %v1588
      %1590 = vmatpush.msra.mxu0 %v1589
      %v1591 = vand.u32 %v645, 4294901760
      %v1592 = vsub.f32 %v645, %v1591
      %1593 = vmatpush.msra.mxu0 %v1592
      %v1594 = vand.u32 %v496, 4294901760
      %v1595 = vsub.f32 %v496, %v1594
      %1596 = vmatmul.f32.gmra.mxu0 %v1595
      %v1597 = vpop.f32.mrf.mxu0
      %v1598 = vadd.f32 %v1544, %v1597
      %1599 = vdwg.mxu0
      %v1600 = vand.u32 %v675, 4294901760
      %1601 = vmatpush.msra.mxu0 %v1600
      %v1602 = vand.u32 %v673, 4294901760
      %1603 = vmatpush.msra.mxu0 %v1602
      %v1604 = vand.u32 %v671, 4294901760
      %1605 = vmatpush.msra.mxu0 %v1604
      %v1606 = vand.u32 %v669, 4294901760
      %1607 = vmatpush.msra.mxu0 %v1606
      %v1608 = vand.u32 %v667, 4294901760
      %1609 = vmatpush.msra.mxu0 %v1608
      %v1610 = vand.u32 %v665, 4294901760
      %1611 = vmatpush.msra.mxu0 %v1610
      %v1612 = vand.u32 %v663, 4294901760
      %1613 = vmatpush.msra.mxu0 %v1612
      %v1614 = vand.u32 %v661, 4294901760
      %1615 = vmatpush.msra.mxu0 %v1614
      %v1616 = vand.u32 %v659, 4294901760
      %1617 = vmatpush.msra.mxu0 %v1616
      %v1618 = vand.u32 %v657, 4294901760
      %1619 = vmatpush.msra.mxu0 %v1618
      %v1620 = vand.u32 %v655, 4294901760
      %1621 = vmatpush.msra.mxu0 %v1620
      %v1622 = vand.u32 %v653, 4294901760
      %1623 = vmatpush.msra.mxu0 %v1622
      %v1624 = vand.u32 %v651, 4294901760
      %1625 = vmatpush.msra.mxu0 %v1624
      %v1626 = vand.u32 %v649, 4294901760
      %1627 = vmatpush.msra.mxu0 %v1626
      %v1628 = vand.u32 %v647, 4294901760
      %1629 = vmatpush.msra.mxu0 %v1628
      %v1630 = vand.u32 %v645, 4294901760
      %1631 = vmatpush.msra.mxu0 %v1630
      %v1632 = vand.u32 %v496, 4294901760
      %v1633 = vsub.f32 %v496, %v1632
      %v1634 = vand.u32 %v1633, 4294901760
      %1635 = vmatmul.f32.gmra.mxu0 %v1634
      %v1636 = vpop.f32.mrf.mxu0
      %v1637 = vadd.f32 %v1598, %v1636
      %1638 = vdwg.mxu0
      %v1639 = vand.u32 %v675, 4294901760
      %v1640 = vsub.f32 %v675, %v1639
      %v1641 = vand.u32 %v1640, 4294901760
      %1642 = vmatpush.msra.mxu0 %v1641
      %v1643 = vand.u32 %v673, 4294901760
      %v1644 = vsub.f32 %v673, %v1643
      %v1645 = vand.u32 %v1644, 4294901760
      %1646 = vmatpush.msra.mxu0 %v1645
      %v1647 = vand.u32 %v671, 4294901760
      %v1648 = vsub.f32 %v671, %v1647
      %v1649 = vand.u32 %v1648, 4294901760
      %1650 = vmatpush.msra.mxu0 %v1649
      %v1651 = vand.u32 %v669, 4294901760
      %v1652 = vsub.f32 %v669, %v1651
      %v1653 = vand.u32 %v1652, 4294901760
      %1654 = vmatpush.msra.mxu0 %v1653
      %v1655 = vand.u32 %v667, 4294901760
      %v1656 = vsub.f32 %v667, %v1655
      %v1657 = vand.u32 %v1656, 4294901760
      %1658 = vmatpush.msra.mxu0 %v1657
      %v1659 = vand.u32 %v665, 4294901760
      %v1660 = vsub.f32 %v665, %v1659
      %v1661 = vand.u32 %v1660, 4294901760
      %1662 = vmatpush.msra.mxu0 %v1661
      %v1663 = vand.u32 %v663, 4294901760
      %v1664 = vsub.f32 %v663, %v1663
      %v1665 = vand.u32 %v1664, 4294901760
      %1666 = vmatpush.msra.mxu0 %v1665
      %v1667 = vand.u32 %v661, 4294901760
      %v1668 = vsub.f32 %v661, %v1667
      %v1669 = vand.u32 %v1668, 4294901760
      %1670 = vmatpush.msra.mxu0 %v1669
      %v1671 = vand.u32 %v659, 4294901760
      %v1672 = vsub.f32 %v659, %v1671
      %v1673 = vand.u32 %v1672, 4294901760
      %1674 = vmatpush.msra.mxu0 %v1673
      %v1675 = vand.u32 %v657, 4294901760
      %v1676 = vsub.f32 %v657, %v1675
      %v1677 = vand.u32 %v1676, 4294901760
      %1678 = vmatpush.msra.mxu0 %v1677
      %v1679 = vand.u32 %v655, 4294901760
      %v1680 = vsub.f32 %v655, %v1679
      %v1681 = vand.u32 %v1680, 4294901760
      %1682 = vmatpush.msra.mxu0 %v1681
      %v1683 = vand.u32 %v653, 4294901760
      %v1684 = vsub.f32 %v653, %v1683
      %v1685 = vand.u32 %v1684, 4294901760
      %1686 = vmatpush.msra.mxu0 %v1685
      %v1687 = vand.u32 %v651, 4294901760
      %v1688 = vsub.f32 %v651, %v1687
      %v1689 = vand.u32 %v1688, 4294901760
      %1690 = vmatpush.msra.mxu0 %v1689
      %v1691 = vand.u32 %v649, 4294901760
      %v1692 = vsub.f32 %v649, %v1691
      %v1693 = vand.u32 %v1692, 4294901760
      %1694 = vmatpush.msra.mxu0 %v1693
      %v1695 = vand.u32 %v647, 4294901760
      %v1696 = vsub.f32 %v647, %v1695
      %v1697 = vand.u32 %v1696, 4294901760
      %1698 = vmatpush.msra.mxu0 %v1697
      %v1699 = vand.u32 %v645, 4294901760
      %v1700 = vsub.f32 %v645, %v1699
      %v1701 = vand.u32 %v1700, 4294901760
      %1702 = vmatpush.msra.mxu0 %v1701
      %v1703 = vand.u32 %v496, 4294901760
      %1704 = vmatmul.f32.gmra.mxu0 %v1703
      %v1705 = vpop.f32.mrf.mxu0
      %v1706 = vadd.f32 %v1637, %v1705
      %1707 = vdwg.mxu0
      %v1708 = vand.u32 %v675, 4294901760
      %1709 = vmatpush.msra.mxu0 %v1708
      %v1710 = vand.u32 %v673, 4294901760
      %1711 = vmatpush.msra.mxu0 %v1710
      %v1712 = vand.u32 %v671, 4294901760
      %1713 = vmatpush.msra.mxu0 %v1712
      %v1714 = vand.u32 %v669, 4294901760
      %1715 = vmatpush.msra.mxu0 %v1714
      %v1716 = vand.u32 %v667, 4294901760
      %1717 = vmatpush.msra.mxu0 %v1716
      %v1718 = vand.u32 %v665, 4294901760
      %1719 = vmatpush.msra.mxu0 %v1718
      %v1720 = vand.u32 %v663, 4294901760
      %1721 = vmatpush.msra.mxu0 %v1720
      %v1722 = vand.u32 %v661, 4294901760
      %1723 = vmatpush.msra.mxu0 %v1722
      %v1724 = vand.u32 %v659, 4294901760
      %1725 = vmatpush.msra.mxu0 %v1724
      %v1726 = vand.u32 %v657, 4294901760
      %1727 = vmatpush.msra.mxu0 %v1726
      %v1728 = vand.u32 %v655, 4294901760
      %1729 = vmatpush.msra.mxu0 %v1728
      %v1730 = vand.u32 %v653, 4294901760
      %1731 = vmatpush.msra.mxu0 %v1730
      %v1732 = vand.u32 %v651, 4294901760
      %1733 = vmatpush.msra.mxu0 %v1732
      %v1734 = vand.u32 %v649, 4294901760
      %1735 = vmatpush.msra.mxu0 %v1734
      %v1736 = vand.u32 %v647, 4294901760
      %1737 = vmatpush.msra.mxu0 %v1736
      %v1738 = vand.u32 %v645, 4294901760
      %1739 = vmatpush.msra.mxu0 %v1738
      %v1740 = vand.u32 %v496, 4294901760
      %1741 = vmatmul.f32.gmra.mxu0 %v1740
      %v1742 = vpop.f32.mrf.mxu0
      %v1743 = vadd.f32 %v1706, %v1742
      %1744 = vdwg.mxu0
      %v1745 = vand.u32 %v707, 4294901760
      %1746 = vmatpush.msra.mxu0 %v1745
      %v1747 = vand.u32 %v705, 4294901760
      %1748 = vmatpush.msra.mxu0 %v1747
      %v1749 = vand.u32 %v703, 4294901760
      %1750 = vmatpush.msra.mxu0 %v1749
      %v1751 = vand.u32 %v701, 4294901760
      %1752 = vmatpush.msra.mxu0 %v1751
      %v1753 = vand.u32 %v699, 4294901760
      %1754 = vmatpush.msra.mxu0 %v1753
      %v1755 = vand.u32 %v697, 4294901760
      %1756 = vmatpush.msra.mxu0 %v1755
      %v1757 = vand.u32 %v695, 4294901760
      %1758 = vmatpush.msra.mxu0 %v1757
      %v1759 = vand.u32 %v693, 4294901760
      %1760 = vmatpush.msra.mxu0 %v1759
      %v1761 = vand.u32 %v691, 4294901760
      %1762 = vmatpush.msra.mxu0 %v1761
      %v1763 = vand.u32 %v689, 4294901760
      %1764 = vmatpush.msra.mxu0 %v1763
      %v1765 = vand.u32 %v687, 4294901760
      %1766 = vmatpush.msra.mxu0 %v1765
      %v1767 = vand.u32 %v685, 4294901760
      %1768 = vmatpush.msra.mxu0 %v1767
      %v1769 = vand.u32 %v683, 4294901760
      %1770 = vmatpush.msra.mxu0 %v1769
      %v1771 = vand.u32 %v681, 4294901760
      %1772 = vmatpush.msra.mxu0 %v1771
      %v1773 = vand.u32 %v679, 4294901760
      %1774 = vmatpush.msra.mxu0 %v1773
      %v1775 = vand.u32 %v677, 4294901760
      %1776 = vmatpush.msra.mxu0 %v1775
      %v1777 = vand.u32 %v642, 4294901760
      %v1778 = vsub.f32 %v642, %v1777
      %v1779 = vand.u32 %v1778, 4294901760
      %v1780 = vsub.f32 %v1778, %v1779
      %v1781 = vand.u32 %v1780, 4294901760
      %1782 = vmatmul.f32.gmra.mxu0 %v1781
      %v1783 = vpop.f32.mrf.mxu0
      %v1784 = vadd.f32 %v1743, %v1783
      %1785 = vdwg.mxu0
      %v1786 = vand.u32 %v707, 4294901760
      %v1787 = vsub.f32 %v707, %v1786
      %v1788 = vand.u32 %v1787, 4294901760
      %v1789 = vsub.f32 %v1787, %v1788
      %v1790 = vand.u32 %v1789, 4294901760
      %1791 = vmatpush.msra.mxu0 %v1790
      %v1792 = vand.u32 %v705, 4294901760
      %v1793 = vsub.f32 %v705, %v1792
      %v1794 = vand.u32 %v1793, 4294901760
      %v1795 = vsub.f32 %v1793, %v1794
      %v1796 = vand.u32 %v1795, 4294901760
      %1797 = vmatpush.msra.mxu0 %v1796
      %v1798 = vand.u32 %v703, 4294901760
      %v1799 = vsub.f32 %v703, %v1798
      %v1800 = vand.u32 %v1799, 4294901760
      %v1801 = vsub.f32 %v1799, %v1800
      %v1802 = vand.u32 %v1801, 4294901760
      %1803 = vmatpush.msra.mxu0 %v1802
      %v1804 = vand.u32 %v701, 4294901760
      %v1805 = vsub.f32 %v701, %v1804
      %v1806 = vand.u32 %v1805, 4294901760
      %v1807 = vsub.f32 %v1805, %v1806
      %v1808 = vand.u32 %v1807, 4294901760
      %1809 = vmatpush.msra.mxu0 %v1808
      %v1810 = vand.u32 %v699, 4294901760
      %v1811 = vsub.f32 %v699, %v1810
      %v1812 = vand.u32 %v1811, 4294901760
      %v1813 = vsub.f32 %v1811, %v1812
      %v1814 = vand.u32 %v1813, 4294901760
      %1815 = vmatpush.msra.mxu0 %v1814
      %v1816 = vand.u32 %v697, 4294901760
      %v1817 = vsub.f32 %v697, %v1816
      %v1818 = vand.u32 %v1817, 4294901760
      %v1819 = vsub.f32 %v1817, %v1818
      %v1820 = vand.u32 %v1819, 4294901760
      %1821 = vmatpush.msra.mxu0 %v1820
      %v1822 = vand.u32 %v695, 4294901760
      %v1823 = vsub.f32 %v695, %v1822
      %v1824 = vand.u32 %v1823, 4294901760
      %v1825 = vsub.f32 %v1823, %v1824
      %v1826 = vand.u32 %v1825, 4294901760
      %1827 = vmatpush.msra.mxu0 %v1826
      %v1828 = vand.u32 %v693, 4294901760
      %v1829 = vsub.f32 %v693, %v1828
      %v1830 = vand.u32 %v1829, 4294901760
      %v1831 = vsub.f32 %v1829, %v1830
      %v1832 = vand.u32 %v1831, 4294901760
      %1833 = vmatpush.msra.mxu0 %v1832
      %v1834 = vand.u32 %v691, 4294901760
      %v1835 = vsub.f32 %v691, %v1834
      %v1836 = vand.u32 %v1835, 4294901760
      %v1837 = vsub.f32 %v1835, %v1836
      %v1838 = vand.u32 %v1837, 4294901760
      %1839 = vmatpush.msra.mxu0 %v1838
      %v1840 = vand.u32 %v689, 4294901760
      %v1841 = vsub.f32 %v689, %v1840
      %v1842 = vand.u32 %v1841, 4294901760
      %v1843 = vsub.f32 %v1841, %v1842
      %v1844 = vand.u32 %v1843, 4294901760
      %1845 = vmatpush.msra.mxu0 %v1844
      %v1846 = vand.u32 %v687, 4294901760
      %v1847 = vsub.f32 %v687, %v1846
      %v1848 = vand.u32 %v1847, 4294901760
      %v1849 = vsub.f32 %v1847, %v1848
      %v1850 = vand.u32 %v1849, 4294901760
      %1851 = vmatpush.msra.mxu0 %v1850
      %v1852 = vand.u32 %v685, 4294901760
      %v1853 = vsub.f32 %v685, %v1852
      %v1854 = vand.u32 %v1853, 4294901760
      %v1855 = vsub.f32 %v1853, %v1854
      %v1856 = vand.u32 %v1855, 4294901760
      %1857 = vmatpush.msra.mxu0 %v1856
      %v1858 = vand.u32 %v683, 4294901760
      %v1859 = vsub.f32 %v683, %v1858
      %v1860 = vand.u32 %v1859, 4294901760
      %v1861 = vsub.f32 %v1859, %v1860
      %v1862 = vand.u32 %v1861, 4294901760
      %1863 = vmatpush.msra.mxu0 %v1862
      %v1864 = vand.u32 %v681, 4294901760
      %v1865 = vsub.f32 %v681, %v1864
      %v1866 = vand.u32 %v1865, 4294901760
      %v1867 = vsub.f32 %v1865, %v1866
      %v1868 = vand.u32 %v1867, 4294901760
      %1869 = vmatpush.msra.mxu0 %v1868
      %v1870 = vand.u32 %v679, 4294901760
      %v1871 = vsub.f32 %v679, %v1870
      %v1872 = vand.u32 %v1871, 4294901760
      %v1873 = vsub.f32 %v1871, %v1872
      %v1874 = vand.u32 %v1873, 4294901760
      %1875 = vmatpush.msra.mxu0 %v1874
      %v1876 = vand.u32 %v677, 4294901760
      %v1877 = vsub.f32 %v677, %v1876
      %v1878 = vand.u32 %v1877, 4294901760
      %v1879 = vsub.f32 %v1877, %v1878
      %v1880 = vand.u32 %v1879, 4294901760
      %1881 = vmatpush.msra.mxu0 %v1880
      %v1882 = vand.u32 %v642, 4294901760
      %1883 = vmatmul.f32.gmra.mxu0 %v1882
      %v1884 = vpop.f32.mrf.mxu0
      %v1885 = vadd.f32 %v1784, %v1884
      %1886 = vdwg.mxu0
      %v1887 = vand.u32 %v707, 4294901760
      %v1888 = vsub.f32 %v707, %v1887
      %1889 = vmatpush.msra.mxu0 %v1888
      %v1890 = vand.u32 %v705, 4294901760
      %v1891 = vsub.f32 %v705, %v1890
      %1892 = vmatpush.msra.mxu0 %v1891
      %v1893 = vand.u32 %v703, 4294901760
      %v1894 = vsub.f32 %v703, %v1893
      %1895 = vmatpush.msra.mxu0 %v1894
      %v1896 = vand.u32 %v701, 4294901760
      %v1897 = vsub.f32 %v701, %v1896
      %1898 = vmatpush.msra.mxu0 %v1897
      %v1899 = vand.u32 %v699, 4294901760
      %v1900 = vsub.f32 %v699, %v1899
      %1901 = vmatpush.msra.mxu0 %v1900
      %v1902 = vand.u32 %v697, 4294901760
      %v1903 = vsub.f32 %v697, %v1902
      %1904 = vmatpush.msra.mxu0 %v1903
      %v1905 = vand.u32 %v695, 4294901760
      %v1906 = vsub.f32 %v695, %v1905
      %1907 = vmatpush.msra.mxu0 %v1906
      %v1908 = vand.u32 %v693, 4294901760
      %v1909 = vsub.f32 %v693, %v1908
      %1910 = vmatpush.msra.mxu0 %v1909
      %v1911 = vand.u32 %v691, 4294901760
      %v1912 = vsub.f32 %v691, %v1911
      %1913 = vmatpush.msra.mxu0 %v1912
      %v1914 = vand.u32 %v689, 4294901760
      %v1915 = vsub.f32 %v689, %v1914
      %1916 = vmatpush.msra.mxu0 %v1915
      %v1917 = vand.u32 %v687, 4294901760
      %v1918 = vsub.f32 %v687, %v1917
      %1919 = vmatpush.msra.mxu0 %v1918
      %v1920 = vand.u32 %v685, 4294901760
      %v1921 = vsub.f32 %v685, %v1920
      %1922 = vmatpush.msra.mxu0 %v1921
      %v1923 = vand.u32 %v683, 4294901760
      %v1924 = vsub.f32 %v683, %v1923
      %1925 = vmatpush.msra.mxu0 %v1924
      %v1926 = vand.u32 %v681, 4294901760
      %v1927 = vsub.f32 %v681, %v1926
      %1928 = vmatpush.msra.mxu0 %v1927
      %v1929 = vand.u32 %v679, 4294901760
      %v1930 = vsub.f32 %v679, %v1929
      %1931 = vmatpush.msra.mxu0 %v1930
      %v1932 = vand.u32 %v677, 4294901760
      %v1933 = vsub.f32 %v677, %v1932
      %1934 = vmatpush.msra.mxu0 %v1933
      %v1935 = vand.u32 %v642, 4294901760
      %v1936 = vsub.f32 %v642, %v1935
      %1937 = vmatmul.f32.gmra.mxu0 %v1936
      %v1938 = vpop.f32.mrf.mxu0
      %v1939 = vadd.f32 %v1885, %v1938
      %1940 = vdwg.mxu0
      %v1941 = vand.u32 %v707, 4294901760
      %1942 = vmatpush.msra.mxu0 %v1941
      %v1943 = vand.u32 %v705, 4294901760
      %1944 = vmatpush.msra.mxu0 %v1943
      %v1945 = vand.u32 %v703, 4294901760
      %1946 = vmatpush.msra.mxu0 %v1945
      %v1947 = vand.u32 %v701, 4294901760
      %1948 = vmatpush.msra.mxu0 %v1947
      %v1949 = vand.u32 %v699, 4294901760
      %1950 = vmatpush.msra.mxu0 %v1949
      %v1951 = vand.u32 %v697, 4294901760
      %1952 = vmatpush.msra.mxu0 %v1951
      %v1953 = vand.u32 %v695, 4294901760
      %1954 = vmatpush.msra.mxu0 %v1953
      %v1955 = vand.u32 %v693, 4294901760
      %1956 = vmatpush.msra.mxu0 %v1955
      %v1957 = vand.u32 %v691, 4294901760
      %1958 = vmatpush.msra.mxu0 %v1957
      %v1959 = vand.u32 %v689, 4294901760
      %1960 = vmatpush.msra.mxu0 %v1959
      %v1961 = vand.u32 %v687, 4294901760
      %1962 = vmatpush.msra.mxu0 %v1961
      %v1963 = vand.u32 %v685, 4294901760
      %1964 = vmatpush.msra.mxu0 %v1963
      %v1965 = vand.u32 %v683, 4294901760
      %1966 = vmatpush.msra.mxu0 %v1965
      %v1967 = vand.u32 %v681, 4294901760
      %1968 = vmatpush.msra.mxu0 %v1967
      %v1969 = vand.u32 %v679, 4294901760
      %1970 = vmatpush.msra.mxu0 %v1969
      %v1971 = vand.u32 %v677, 4294901760
      %1972 = vmatpush.msra.mxu0 %v1971
      %v1973 = vand.u32 %v642, 4294901760
      %v1974 = vsub.f32 %v642, %v1973
      %v1975 = vand.u32 %v1974, 4294901760
      %1976 = vmatmul.f32.gmra.mxu0 %v1975
      %v1977 = vpop.f32.mrf.mxu0
      %v1978 = vadd.f32 %v1939, %v1977
      %1979 = vdwg.mxu0
      %v1980 = vand.u32 %v707, 4294901760
      %v1981 = vsub.f32 %v707, %v1980
      %v1982 = vand.u32 %v1981, 4294901760
      %1983 = vmatpush.msra.mxu0 %v1982
      %v1984 = vand.u32 %v705, 4294901760
      %v1985 = vsub.f32 %v705, %v1984
      %v1986 = vand.u32 %v1985, 4294901760
      %1987 = vmatpush.msra.mxu0 %v1986
      %v1988 = vand.u32 %v703, 4294901760
      %v1989 = vsub.f32 %v703, %v1988
      %v1990 = vand.u32 %v1989, 4294901760
      %1991 = vmatpush.msra.mxu0 %v1990
      %v1992 = vand.u32 %v701, 4294901760
      %v1993 = vsub.f32 %v701, %v1992
      %v1994 = vand.u32 %v1993, 4294901760
      %1995 = vmatpush.msra.mxu0 %v1994
      %v1996 = vand.u32 %v699, 4294901760
      %v1997 = vsub.f32 %v699, %v1996
      %v1998 = vand.u32 %v1997, 4294901760
      %1999 = vmatpush.msra.mxu0 %v1998
      %v2000 = vand.u32 %v697, 4294901760
      %v2001 = vsub.f32 %v697, %v2000
      %v2002 = vand.u32 %v2001, 4294901760
      %2003 = vmatpush.msra.mxu0 %v2002
      %v2004 = vand.u32 %v695, 4294901760
      %v2005 = vsub.f32 %v695, %v2004
      %v2006 = vand.u32 %v2005, 4294901760
      %2007 = vmatpush.msra.mxu0 %v2006
      %v2008 = vand.u32 %v693, 4294901760
      %v2009 = vsub.f32 %v693, %v2008
      %v2010 = vand.u32 %v2009, 4294901760
      %2011 = vmatpush.msra.mxu0 %v2010
      %v2012 = vand.u32 %v691, 4294901760
      %v2013 = vsub.f32 %v691, %v2012
      %v2014 = vand.u32 %v2013, 4294901760
      %2015 = vmatpush.msra.mxu0 %v2014
      %v2016 = vand.u32 %v689, 4294901760
      %v2017 = vsub.f32 %v689, %v2016
      %v2018 = vand.u32 %v2017, 4294901760
      %2019 = vmatpush.msra.mxu0 %v2018
      %v2020 = vand.u32 %v687, 4294901760
      %v2021 = vsub.f32 %v687, %v2020
      %v2022 = vand.u32 %v2021, 4294901760
      %2023 = vmatpush.msra.mxu0 %v2022
      %v2024 = vand.u32 %v685, 4294901760
      %v2025 = vsub.f32 %v685, %v2024
      %v2026 = vand.u32 %v2025, 4294901760
      %2027 = vmatpush.msra.mxu0 %v2026
      %v2028 = vand.u32 %v683, 4294901760
      %v2029 = vsub.f32 %v683, %v2028
      %v2030 = vand.u32 %v2029, 4294901760
      %2031 = vmatpush.msra.mxu0 %v2030
      %v2032 = vand.u32 %v681, 4294901760
      %v2033 = vsub.f32 %v681, %v2032
      %v2034 = vand.u32 %v2033, 4294901760
      %2035 = vmatpush.msra.mxu0 %v2034
      %v2036 = vand.u32 %v679, 4294901760
      %v2037 = vsub.f32 %v679, %v2036
      %v2038 = vand.u32 %v2037, 4294901760
      %2039 = vmatpush.msra.mxu0 %v2038
      %v2040 = vand.u32 %v677, 4294901760
      %v2041 = vsub.f32 %v677, %v2040
      %v2042 = vand.u32 %v2041, 4294901760
      %2043 = vmatpush.msra.mxu0 %v2042
      %v2044 = vand.u32 %v642, 4294901760
      %2045 = vmatmul.f32.gmra.mxu0 %v2044
      %v2046 = vpop.f32.mrf.mxu0
      %v2047 = vadd.f32 %v1978, %v2046
      %2048 = vdwg.mxu0
      %v2049 = vand.u32 %v707, 4294901760
      %2050 = vmatpush.msra.mxu0 %v2049
      %v2051 = vand.u32 %v705, 4294901760
      %2052 = vmatpush.msra.mxu0 %v2051
      %v2053 = vand.u32 %v703, 4294901760
      %2054 = vmatpush.msra.mxu0 %v2053
      %v2055 = vand.u32 %v701, 4294901760
      %2056 = vmatpush.msra.mxu0 %v2055
      %v2057 = vand.u32 %v699, 4294901760
      %2058 = vmatpush.msra.mxu0 %v2057
      %v2059 = vand.u32 %v697, 4294901760
      %2060 = vmatpush.msra.mxu0 %v2059
      %v2061 = vand.u32 %v695, 4294901760
      %2062 = vmatpush.msra.mxu0 %v2061
      %v2063 = vand.u32 %v693, 4294901760
      %2064 = vmatpush.msra.mxu0 %v2063
      %v2065 = vand.u32 %v691, 4294901760
      %2066 = vmatpush.msra.mxu0 %v2065
      %v2067 = vand.u32 %v689, 4294901760
      %2068 = vmatpush.msra.mxu0 %v2067
      %v2069 = vand.u32 %v687, 4294901760
      %2070 = vmatpush.msra.mxu0 %v2069
      %v2071 = vand.u32 %v685, 4294901760
      %2072 = vmatpush.msra.mxu0 %v2071
      %v2073 = vand.u32 %v683, 4294901760
      %2074 = vmatpush.msra.mxu0 %v2073
      %v2075 = vand.u32 %v681, 4294901760
      %2076 = vmatpush.msra.mxu0 %v2075
      %v2077 = vand.u32 %v679, 4294901760
      %2078 = vmatpush.msra.mxu0 %v2077
      %v2079 = vand.u32 %v677, 4294901760
      %2080 = vmatpush.msra.mxu0 %v2079
      %v2081 = vand.u32 %v642, 4294901760
      %2082 = vmatmul.f32.gmra.mxu0 %v2081
      %v2083 = vpop.f32.mrf.mxu0
      %v2084 = vadd.f32 %v2047, %v2083
      %2085 = vdwg.mxu0
      %v2086 = vld [vmem:[%s5] sm:$0xff]
      %2088 = vset.pattern.permute.xlu0 0
      %2089 = vperm.xlu0 %2088, %v2086
      %v2090 = vpop.permute.xlu0 %2089
      %v2092 = vadd.f32 %v1402, %v2090
      %v2093 = vadd.f32 %v2084, %v2090
      %vm2094 = vcmp.gt.f32.partialorder %v2092, 0.0
      %vm2095 = vcmp.gt.f32.partialorder %v2093, 0.0
      %v2096 = vmul.f32 %v2092, 0.01
      %v2097 = vmul.f32 %v2093, 0.01
      %v2098 = vsel %vm2094, %v2092, %v2096
      %v2099 = vsel %vm2095, %v2093, %v2097
      %v2100 = vld [vmem:[%s6] sm:$0xff]
      %v2101 = vld [vmem:[%s7] sm:$0xff]
      %2103 = vset.pattern.permute.xlu0 0
      %2104 = vperm.xlu0 %2103, %v2101
      %v2105 = vpop.permute.xlu0 %2104
      %v2108 = vsel %vm348, %v2100, 0
      %2110 = vmatpush.msra.mxu0 0.0
      %2111 = vmatpush.msra.mxu0 0.0
      %2112 = vmatpush.msra.mxu0 0.0
      %2113 = vmatpush.msra.mxu0 0.0
      %2114 = vmatpush.msra.mxu0 0.0
      %2115 = vmatpush.msra.mxu0 0.0
      %2116 = vmatpush.msra.mxu0 0.0
      %2117 = vmatpush.msra.mxu0 0.0
      %2118 = vmatpush.msra.mxu0 0.0
      %2119 = vmatpush.msra.mxu0 0.0
      %2120 = vmatpush.msra.mxu0 0.0
      %2121 = vmatpush.msra.mxu0 0.0
      %2122 = vmatpush.msra.mxu0 0.0
      %2123 = vmatpush.msra.mxu0 0.0
      %2124 = vmatpush.msra.mxu0 0.0
      %v2125 = vand.u32 %v2098, 4294901760
      %2126 = vmatpush.msra.mxu0 %v2125
      %v2127 = vand.u32 %v2108, 4294901760
      %v2128 = vsub.f32 %v2108, %v2127
      %v2129 = vand.u32 %v2128, 4294901760
      %v2130 = vsub.f32 %v2128, %v2129
      %v2131 = vand.u32 %v2130, 4294901760
      %2132 = vmatmul.f32.gmra.mxu0 %v2131
      %v2133 = vpop.f32.mrf.mxu0
      %v2134 = vadd.f32 %v2105, %v2133
      %2135 = vdwg.mxu0
      %2136 = vmatpush.msra.mxu0 0.0
      %2137 = vmatpush.msra.mxu0 0.0
      %2138 = vmatpush.msra.mxu0 0.0
      %2139 = vmatpush.msra.mxu0 0.0
      %2140 = vmatpush.msra.mxu0 0.0
      %2141 = vmatpush.msra.mxu0 0.0
      %2142 = vmatpush.msra.mxu0 0.0
      %2143 = vmatpush.msra.mxu0 0.0
      %2144 = vmatpush.msra.mxu0 0.0
      %2145 = vmatpush.msra.mxu0 0.0
      %2146 = vmatpush.msra.mxu0 0.0
      %2147 = vmatpush.msra.mxu0 0.0
      %2148 = vmatpush.msra.mxu0 0.0
      %2149 = vmatpush.msra.mxu0 0.0
      %2150 = vmatpush.msra.mxu0 0.0
      %v2151 = vand.u32 %v2098, 4294901760
      %v2152 = vsub.f32 %v2098, %v2151
      %v2153 = vand.u32 %v2152, 4294901760
      %v2154 = vsub.f32 %v2152, %v2153
      %v2155 = vand.u32 %v2154, 4294901760
      %2156 = vmatpush.msra.mxu0 %v2155
      %v2157 = vand.u32 %v2108, 4294901760
      %2158 = vmatmul.f32.gmra.mxu0 %v2157
      %v2159 = vpop.f32.mrf.mxu0
      %v2160 = vadd.f32 %v2134, %v2159
      %2161 = vdwg.mxu0
      %2162 = vmatpush.msra.mxu0 0.0
      %2163 = vmatpush.msra.mxu0 0.0
      %2164 = vmatpush.msra.mxu0 0.0
      %2165 = vmatpush.msra.mxu0 0.0
      %2166 = vmatpush.msra.mxu0 0.0
      %2167 = vmatpush.msra.mxu0 0.0
      %2168 = vmatpush.msra.mxu0 0.0
      %2169 = vmatpush.msra.mxu0 0.0
      %2170 = vmatpush.msra.mxu0 0.0
      %2171 = vmatpush.msra.mxu0 0.0
      %2172 = vmatpush.msra.mxu0 0.0
      %2173 = vmatpush.msra.mxu0 0.0
      %2174 = vmatpush.msra.mxu0 0.0
      %2175 = vmatpush.msra.mxu0 0.0
      %2176 = vmatpush.msra.mxu0 0.0
      %v2177 = vand.u32 %v2098, 4294901760
      %v2178 = vsub.f32 %v2098, %v2177
      %2179 = vmatpush.msra.mxu0 %v2178
      %v2180 = vand.u32 %v2108, 4294901760
      %v2181 = vsub.f32 %v2108, %v2180
      %2182 = vmatmul.f32.gmra.mxu0 %v2181
      %v2183 = vpop.f32.mrf.mxu0
      %v2184 = vadd.f32 %v2160, %v2183
      %2185 = vdwg.mxu0
      %2186 = vmatpush.msra.mxu0 0.0
      %2187 = vmatpush.msra.mxu0 0.0
      %2188 = vmatpush.msra.mxu0 0.0
      %2189 = vmatpush.msra.mxu0 0.0
      %2190 = vmatpush.msra.mxu0 0.0
      %2191 = vmatpush.msra.mxu0 0.0
      %2192 = vmatpush.msra.mxu0 0.0
      %2193 = vmatpush.msra.mxu0 0.0
      %2194 = vmatpush.msra.mxu0 0.0
      %2195 = vmatpush.msra.mxu0 0.0
      %2196 = vmatpush.msra.mxu0 0.0
      %2197 = vmatpush.msra.mxu0 0.0
      %2198 = vmatpush.msra.mxu0 0.0
      %2199 = vmatpush.msra.mxu0 0.0
      %2200 = vmatpush.msra.mxu0 0.0
      %v2201 = vand.u32 %v2098, 4294901760
      %2202 = vmatpush.msra.mxu0 %v2201
      %v2203 = vand.u32 %v2108, 4294901760
      %v2204 = vsub.f32 %v2108, %v2203
      %v2205 = vand.u32 %v2204, 4294901760
      %2206 = vmatmul.f32.gmra.mxu0 %v2205
      %v2207 = vpop.f32.mrf.mxu0
      %v2208 = vadd.f32 %v2184, %v2207
      %2209 = vdwg.mxu0
      %2210 = vmatpush.msra.mxu0 0.0
      %2211 = vmatpush.msra.mxu0 0.0
      %2212 = vmatpush.msra.mxu0 0.0
      %2213 = vmatpush.msra.mxu0 0.0
      %2214 = vmatpush.msra.mxu0 0.0
      %2215 = vmatpush.msra.mxu0 0.0
      %2216 = vmatpush.msra.mxu0 0.0
      %2217 = vmatpush.msra.mxu0 0.0
      %2218 = vmatpush.msra.mxu0 0.0
      %2219 = vmatpush.msra.mxu0 0.0
      %2220 = vmatpush.msra.mxu0 0.0
      %2221 = vmatpush.msra.mxu0 0.0
      %2222 = vmatpush.msra.mxu0 0.0
      %2223 = vmatpush.msra.mxu0 0.0
      %2224 = vmatpush.msra.mxu0 0.0
      %v2225 = vand.u32 %v2098, 4294901760
      %v2226 = vsub.f32 %v2098, %v2225
      %v2227 = vand.u32 %v2226, 4294901760
      %2228 = vmatpush.msra.mxu0 %v2227
      %v2229 = vand.u32 %v2108, 4294901760
      %2230 = vmatmul.f32.gmra.mxu0 %v2229
      %v2231 = vpop.f32.mrf.mxu0
      %v2232 = vadd.f32 %v2208, %v2231
      %2233 = vdwg.mxu0
      %2234 = vmatpush.msra.mxu0 0.0
      %2235 = vmatpush.msra.mxu0 0.0
      %2236 = vmatpush.msra.mxu0 0.0
      %2237 = vmatpush.msra.mxu0 0.0
      %2238 = vmatpush.msra.mxu0 0.0
      %2239 = vmatpush.msra.mxu0 0.0
      %2240 = vmatpush.msra.mxu0 0.0
      %2241 = vmatpush.msra.mxu0 0.0
      %2242 = vmatpush.msra.mxu0 0.0
      %2243 = vmatpush.msra.mxu0 0.0
      %2244 = vmatpush.msra.mxu0 0.0
      %2245 = vmatpush.msra.mxu0 0.0
      %2246 = vmatpush.msra.mxu0 0.0
      %2247 = vmatpush.msra.mxu0 0.0
      %2248 = vmatpush.msra.mxu0 0.0
      %v2249 = vand.u32 %v2098, 4294901760
      %2250 = vmatpush.msra.mxu0 %v2249
      %v2251 = vand.u32 %v2108, 4294901760
      %2252 = vmatmul.f32.gmra.mxu0 %v2251
      %v2253 = vpop.f32.mrf.mxu0
      %v2254 = vadd.f32 %v2232, %v2253
      %2255 = vdwg.mxu0
      %2256 = vmatpush.msra.mxu0 0.0
      %2257 = vmatpush.msra.mxu0 0.0
      %2258 = vmatpush.msra.mxu0 0.0
      %2259 = vmatpush.msra.mxu0 0.0
      %2260 = vmatpush.msra.mxu0 0.0
      %2261 = vmatpush.msra.mxu0 0.0
      %2262 = vmatpush.msra.mxu0 0.0
      %2263 = vmatpush.msra.mxu0 0.0
      %2264 = vmatpush.msra.mxu0 0.0
      %2265 = vmatpush.msra.mxu0 0.0
      %2266 = vmatpush.msra.mxu0 0.0
      %2267 = vmatpush.msra.mxu0 0.0
      %2268 = vmatpush.msra.mxu0 0.0
      %2269 = vmatpush.msra.mxu0 0.0
      %2270 = vmatpush.msra.mxu0 0.0
      %v2271 = vand.u32 %v2099, 4294901760
      %2272 = vmatpush.msra.mxu0 %v2271
      %v2273 = vand.u32 %v2108, 4294901760
      %v2274 = vsub.f32 %v2108, %v2273
      %v2275 = vand.u32 %v2274, 4294901760
      %v2276 = vsub.f32 %v2274, %v2275
      %v2277 = vand.u32 %v2276, 4294901760
      %2278 = vmatmul.f32.gmra.mxu0 %v2277
      %v2279 = vpop.f32.mrf.mxu0
      %v2280 = vadd.f32 %v2105, %v2279
      %2281 = vdwg.mxu0
      %2282 = vmatpush.msra.mxu0 0.0
      %2283 = vmatpush.msra.mxu0 0.0
      %2284 = vmatpush.msra.mxu0 0.0
      %2285 = vmatpush.msra.mxu0 0.0
      %2286 = vmatpush.msra.mxu0 0.0
      %2287 = vmatpush.msra.mxu0 0.0
      %2288 = vmatpush.msra.mxu0 0.0
      %2289 = vmatpush.msra.mxu0 0.0
      %2290 = vmatpush.msra.mxu0 0.0
      %2291 = vmatpush.msra.mxu0 0.0
      %2292 = vmatpush.msra.mxu0 0.0
      %2293 = vmatpush.msra.mxu0 0.0
      %2294 = vmatpush.msra.mxu0 0.0
      %2295 = vmatpush.msra.mxu0 0.0
      %2296 = vmatpush.msra.mxu0 0.0
      %v2297 = vand.u32 %v2099, 4294901760
      %v2298 = vsub.f32 %v2099, %v2297
      %v2299 = vand.u32 %v2298, 4294901760
      %v2300 = vsub.f32 %v2298, %v2299
      %v2301 = vand.u32 %v2300, 4294901760
      %2302 = vmatpush.msra.mxu0 %v2301
      %v2303 = vand.u32 %v2108, 4294901760
      %2304 = vmatmul.f32.gmra.mxu0 %v2303
      %v2305 = vpop.f32.mrf.mxu0
      %v2306 = vadd.f32 %v2280, %v2305
      %2307 = vdwg.mxu0
      %2308 = vmatpush.msra.mxu0 0.0
      %2309 = vmatpush.msra.mxu0 0.0
      %2310 = vmatpush.msra.mxu0 0.0
      %2311 = vmatpush.msra.mxu0 0.0
      %2312 = vmatpush.msra.mxu0 0.0
      %2313 = vmatpush.msra.mxu0 0.0
      %2314 = vmatpush.msra.mxu0 0.0
      %2315 = vmatpush.msra.mxu0 0.0
      %2316 = vmatpush.msra.mxu0 0.0
      %2317 = vmatpush.msra.mxu0 0.0
      %2318 = vmatpush.msra.mxu0 0.0
      %2319 = vmatpush.msra.mxu0 0.0
      %2320 = vmatpush.msra.mxu0 0.0
      %2321 = vmatpush.msra.mxu0 0.0
      %2322 = vmatpush.msra.mxu0 0.0
      %v2323 = vand.u32 %v2099, 4294901760
      %v2324 = vsub.f32 %v2099, %v2323
      %2325 = vmatpush.msra.mxu0 %v2324
      %v2326 = vand.u32 %v2108, 4294901760
      %v2327 = vsub.f32 %v2108, %v2326
      %2328 = vmatmul.f32.gmra.mxu0 %v2327
      %v2329 = vpop.f32.mrf.mxu0
      %v2330 = vadd.f32 %v2306, %v2329
      %2331 = vdwg.mxu0
      %2332 = vmatpush.msra.mxu0 0.0
      %2333 = vmatpush.msra.mxu0 0.0
      %2334 = vmatpush.msra.mxu0 0.0
      %2335 = vmatpush.msra.mxu0 0.0
      %2336 = vmatpush.msra.mxu0 0.0
      %2337 = vmatpush.msra.mxu0 0.0
      %2338 = vmatpush.msra.mxu0 0.0
      %2339 = vmatpush.msra.mxu0 0.0
      %2340 = vmatpush.msra.mxu0 0.0
      %2341 = vmatpush.msra.mxu0 0.0
      %2342 = vmatpush.msra.mxu0 0.0
      %2343 = vmatpush.msra.mxu0 0.0
      %2344 = vmatpush.msra.mxu0 0.0
      %2345 = vmatpush.msra.mxu0 0.0
      %2346 = vmatpush.msra.mxu0 0.0
      %v2347 = vand.u32 %v2099, 4294901760
      %2348 = vmatpush.msra.mxu0 %v2347
      %v2349 = vand.u32 %v2108, 4294901760
      %v2350 = vsub.f32 %v2108, %v2349
      %v2351 = vand.u32 %v2350, 4294901760
      %2352 = vmatmul.f32.gmra.mxu0 %v2351
      %v2353 = vpop.f32.mrf.mxu0
      %v2354 = vadd.f32 %v2330, %v2353
      %2355 = vdwg.mxu0
      %2356 = vmatpush.msra.mxu0 0.0
      %2357 = vmatpush.msra.mxu0 0.0
      %2358 = vmatpush.msra.mxu0 0.0
      %2359 = vmatpush.msra.mxu0 0.0
      %2360 = vmatpush.msra.mxu0 0.0
      %2361 = vmatpush.msra.mxu0 0.0
      %2362 = vmatpush.msra.mxu0 0.0
      %2363 = vmatpush.msra.mxu0 0.0
      %2364 = vmatpush.msra.mxu0 0.0
      %2365 = vmatpush.msra.mxu0 0.0
      %2366 = vmatpush.msra.mxu0 0.0
      %2367 = vmatpush.msra.mxu0 0.0
      %2368 = vmatpush.msra.mxu0 0.0
      %2369 = vmatpush.msra.mxu0 0.0
      %2370 = vmatpush.msra.mxu0 0.0
      %v2371 = vand.u32 %v2099, 4294901760
      %v2372 = vsub.f32 %v2099, %v2371
      %v2373 = vand.u32 %v2372, 4294901760
      %2374 = vmatpush.msra.mxu0 %v2373
      %v2375 = vand.u32 %v2108, 4294901760
      %2376 = vmatmul.f32.gmra.mxu0 %v2375
      %v2377 = vpop.f32.mrf.mxu0
      %v2378 = vadd.f32 %v2354, %v2377
      %2379 = vdwg.mxu0
      %2380 = vmatpush.msra.mxu0 0.0
      %2381 = vmatpush.msra.mxu0 0.0
      %2382 = vmatpush.msra.mxu0 0.0
      %2383 = vmatpush.msra.mxu0 0.0
      %2384 = vmatpush.msra.mxu0 0.0
      %2385 = vmatpush.msra.mxu0 0.0
      %2386 = vmatpush.msra.mxu0 0.0
      %2387 = vmatpush.msra.mxu0 0.0
      %2388 = vmatpush.msra.mxu0 0.0
      %2389 = vmatpush.msra.mxu0 0.0
      %2390 = vmatpush.msra.mxu0 0.0
      %2391 = vmatpush.msra.mxu0 0.0
      %2392 = vmatpush.msra.mxu0 0.0
      %2393 = vmatpush.msra.mxu0 0.0
      %2394 = vmatpush.msra.mxu0 0.0
      %v2395 = vand.u32 %v2099, 4294901760
      %2396 = vmatpush.msra.mxu0 %v2395
      %v2397 = vand.u32 %v2108, 4294901760
      %2398 = vmatmul.f32.gmra.mxu0 %v2397
      %v2399 = vpop.f32.mrf.mxu0
      %v2400 = vadd.f32 %v2378, %v2399
      %2401 = vdwg.mxu0
      %vm2402 = vcmp.gt.f32.partialorder %v2254, 0.0
      %vm2403 = vcmp.gt.f32.partialorder %v2400, 0.0
      %v2404 = vmul.f32 %v2254, 0.01
      %v2405 = vmul.f32 %v2400, 0.01
      %v2406 = vsel %vm2402, %v2254, %v2404
      %v2407 = vsel %vm2403, %v2400, %v2405
      %v2408 = vadd.f32 %v2406, %v345
      %v2409 = vadd.f32 %v2407, %v346
      %v2410 = vmax.f32 %v2408, 0.0
      %v2411 = vmax.f32 %v2409, 0.0
      %2412 = vst [vmem:[%s343] sm:$0xff] %v2410
      %2413 = vst [vmem:[%s343 + $0x8] sm:$0xff] %v2411
      %s2414 = smul.u32 2, %s24
      %p2415 = scmp.lt.s32.totalorder %s23, 1
      %s2416 = scalar_select %p2415, %s23, 1
      %p2417 = scmp.lt.s32.totalorder %s2414, 1
      %s2418 = scalar_select %p2417, %s2414, 1
      %s2419 = smul.addr %s2416, 2
      %s2420 = sadd.s32 %s2418, %s2419
      %s2421 = smul.addr %s2420, 8
      %s2422 = scalar_lea.vmem %s8, %s2421
      // Predicated region
      $region53: #{s_gcn_forward.1} parent=51 // pred_check
        %p2423 = pneg %p226
      $region54: #{s_gcn_forward.1} parent=51 // pred_check_branch
        %2425 = sbr.rel (%p2423) target = $region56
      $region55: #{s_gcn_forward.1} parent=51 // pred_region
        %s2426 = smul.u32 2, %s24
      $region56: #{s_gcn_forward.1} parent=51 // pred_fallthru
        _
    $region52: #{s_gcn_forward.1} parent=5 // pred_fallthru
      _
    %p2427 = scmp.le.s32.totalorder 2, %s14
    // Predicated region
    $region57: #{s_gcn_forward.1} parent=5 // pred_check
      %p2428 = pneg %p2427
    $region58: #{s_gcn_forward.1} parent=5 // pred_check_branch
      %2430 = sbr.rel (%p2428) target = $region60
    $region59: #{s_gcn_forward.1} parent=5 // pred_region
      %s2431 = ssub.s32 %s14, 2
      // Predicated region
      $region61: #{s_gcn_forward.1} parent=59 // pred_check
        %p2432 = pneg %p232
      $region62: #{s_gcn_forward.1} parent=59 // pred_check_branch
        %2434 = sbr.rel (%p2432) target = $region64
      $region63: #{s_gcn_forward.1} parent=59 // pred_region
        %s2435 = smul.u32 2, %s26
        %p2436 = scmp.lt.s32.totalorder %s25, 1
        %s2437 = scalar_select %p2436, %s25, 1
        %p2438 = scmp.lt.s32.totalorder %s2435, 1
        %s2439 = scalar_select %p2438, %s2435, 1
        %s2440 = smul.addr %s2437, 2
        %s2441 = sadd.s32 %s2439, %s2440
        %s2442 = smul.addr %s2441, 8
        %s2443 = scalar_lea.vmem %s8, %s2442
      $region64: #{s_gcn_forward.1} parent=59 // pred_fallthru
        _
    $region60: #{s_gcn_forward.1} parent=5 // pred_fallthru
      _
  $region6: #{s_gcn_forward.1} parent=0 // loop_footer
    %s18 = sadd.s32 1, %s14
  $region7: #{s_gcn_forward.1} parent=0 // loop_footer_branch
    %13 = sbr.rel target = $region3
  $region8: #{s_gcn_forward.1} parent=0 // loop_exit
    _

</llo_original>
